<compile_context>
chip_gen: v5e
topology: v5e:2x2
jax: 0.10.0
libtpu: 0.0.40
codegen_flags: <defaults>
</compile_context>

<pallas_src>
import functools

import jax
import jax.numpy as jnp
import numpy as np
from jax.experimental import pallas as pl
from jax.experimental.pallas import tpu as pltpu

_LANE = 128
_SUBLANE = 8


def _round_up(x, m):
    return ((x + m - 1) // m) * m


def siren_mlp_kernel(x_ref, *refs, n_layers, last_is_linear):
    """Fused SIREN stack on one (tm, f0) coordinate tile.

    refs = (w_0, b_0, ..., w_{L-1}, b_{L-1}, o_ref).  Weights are stored
    pre-transposed (in_f, out_f) and w0 is already folded into W and b for
    every sin layer, so each layer is just:  y = h @ W + b ; h = sin(y).
    """
    o_ref = refs[-1]
    h = x_ref[...]                                    # (tm, f0), f0 unpadded
    for l in range(n_layers):
        w = refs[2 * l][...]                          # (in_w, out_w) resident in VMEM
        b = refs[2 * l + 1][...]                      # (1, out_w) float32
        y = jnp.dot(h.astype(w.dtype), w,
                    preferred_element_type=jnp.float32) + b
        if not (last_is_linear and l == n_layers - 1):
            y = jnp.sin(y)                            # w0 pre-folded into w, b
        h = y
    o_ref[...] = h.astype(o_ref.dtype)


def siren_mlp(x, params, *, w0=30.0, last_is_linear=True, tm=1024,
              compute_dtype=jnp.float32, interpret=False):
    """Apply a stack of SirenLayers in ONE pallas_call.

    x:      (N, f0) coordinates (f0 stays unpadded, e.g. 2 or 3).
    params: [(w_t_0, b_0), ...] with w_t_l shaped (f_l, f_{l+1}) (nn.Linear
            weight already transposed) and b_l shaped (f_{l+1},).
    Each layer computes y = h @ w_t + b, then sin(w0*y) unless it is the last
    layer and last_is_linear (== SirenLayer.is_last).
    """
    n_layers = len(params)
    assert n_layers >= 1
    N, f0 = (int(d) for d in x.shape)
    feats = [f0] + [int(w.shape[1]) for (w, _) in params]
    for l, (w, b) in enumerate(params):
        assert tuple(w.shape) == (feats[l], feats[l + 1]), "layer widths must chain"
        assert tuple(b.shape) == (feats[l + 1],)

    f_out = feats[-1]
    # Kernel-side widths: coordinate dim and final output dim stay UNPADDED
    # (full-array last-dim exemption); hidden widths pad to multiples of 128.
    in_w = [f0] + [_round_up(feats[l], _LANE) for l in range(1, n_layers)]
    out_w = in_w[1:] + [f_out]

    # ---- host-side parameter prep (once): pad, fold w0, cast ----------------
    w_in, b_in, w_dtypes = [], [], []
    for l, (w, b) in enumerate(params):
        apply_sin = not (last_is_linear and l == n_layers - 1)
        scale = float(w0) if apply_sin else 1.0
        wp = jnp.asarray(w, jnp.float32)
        if wp.shape != (in_w[l], out_w[l]):
            wp = jnp.pad(wp, ((0, in_w[l] - wp.shape[0]),
                              (0, out_w[l] - wp.shape[1])))
        bp = jnp.asarray(b, jnp.float32)
        if bp.shape[0] != out_w[l]:
            bp = jnp.pad(bp, (0, out_w[l] - bp.shape[0]))
        # Layer 0 stays f32 even for bf16 compute: never quantize coordinates.
        w_dt = jnp.dtype(jnp.float32) if l == 0 else jnp.dtype(compute_dtype)
        w_in.append((wp * scale).astype(w_dt))
        b_in.append((bp * scale).reshape(1, out_w[l]).astype(jnp.float32))
        w_dtypes.append(w_dt)

    x_item = jnp.dtype(x.dtype).itemsize

    # ---- batch tiling: no host padding; ragged last tile is masked ----------
    tm = _round_up(max(_SUBLANE, min(int(tm), _round_up(N, _SUBLANE))), _SUBLANE)
    if N >= 2 * _SUBLANE and pl.cdiv(N, tm) < 2:
        # Keep >= 2 grid steps so ("parallel",) can split across v7x's 2 TCs.
        tm = _round_up(pl.cdiv(N, 2), _SUBLANE)

    def _vmem_need(tile_m):
        lane = lambda n: _round_up(max(int(n), 1), _LANE)
        sub = lambda n: _round_up(max(int(n), 1), _SUBLANE)
        need = 2 * sub(tile_m) * lane(f0) * x_item          # x tiles (double-buffered)
        need += 2 * sub(tile_m) * lane(f_out) * x_item      # out tiles (double-buffered)
        for l in range(n_layers):                           # resident params, 1 copy each
            need += sub(in_w[l]) * lane(out_w[l]) * w_dtypes[l].itemsize
            need += _SUBLANE * lane(out_w[l]) * 4
        live_w = max(lane(d) for d in ([f0] + out_w))
        need += 3 * sub(tile_m) * live_w * 4                # live h, y, cast copy (f32)
        return int(need)

    try:
        phys_vmem = int(pltpu.get_tpu_info().vmem_capacity_bytes)
    except Exception:
        phys_vmem = 64 * 1024 * 1024          # assume the smallest (v7x: 64 MiB/core)
    vmem_cap = int(phys_vmem * 0.85)          # leave headroom for compiler scratch
    while _vmem_need(tm) > vmem_cap and tm > 64:
        tm = _round_up(max(tm // 2, 64), _SUBLANE)

    grid = (pl.cdiv(N, tm),)
    need = _vmem_need(tm)
    vmem_limit = None
    if need > 16 * 1024 * 1024:               # above smallest scoped default (v5e)
        vmem_limit = min(need + need // 2, vmem_cap)

    # ---- specs ---------------------------------------------------------------
    resident = pl.BlockSpec(memory_space=pltpu.MemorySpace.VMEM)  # whole array, 1 copy
    in_specs = [pl.BlockSpec((tm, f0), lambda i: (i, 0))]
    flat_inputs = [x]
    for l in range(n_layers):
        in_specs += [resident, resident]
        flat_inputs += [w_in[l], b_in[l]]

    out_spec = pl.BlockSpec((tm, f_out), lambda i: (i, 0))
    out_shape = jax.ShapeDtypeStruct((N, f_out), x.dtype)

    flops = sum(2 * N * in_w[l] * out_w[l] for l in range(n_layers))
    n_sin = n_layers - (1 if last_is_linear else 0)
    transcendentals = sum(N * out_w[l] for l in range(n_sin))
    bytes_accessed = (N * f0 * x_item
                      + sum(int(w.size) * w.dtype.itemsize for w in w_in)
                      + sum(int(b.size) * b.dtype.itemsize for b in b_in)
                      + N * f_out * x_item)

    kernel = functools.partial(siren_mlp_kernel, n_layers=n_layers,
                               last_is_linear=bool(last_is_linear))

    return pl.pallas_call(
        kernel,
        out_shape=out_shape,
        grid_spec=pltpu.PrefetchScalarGridSpec(
            num_scalar_prefetch=0,
            grid=grid,
            in_specs=in_specs,
            out_specs=out_spec,
        ),
        compiler_params=pltpu.CompilerParams(
            dimension_semantics=("parallel",),
            vmem_limit_bytes=vmem_limit,
        ),
        cost_estimate=pl.CostEstimate(
            flops=int(flops),
            transcendentals=int(transcendentals),
            bytes_accessed=int(bytes_accessed),
        ),
        interpret=interpret,
    )(*flat_inputs)


def siren_layer(x, w_t, bias, *, w0=30.0, is_last=False, tm=1024,
                compute_dtype=jnp.float32, interpret=False):
    """Single SirenLayer forward (the PyTorch module): y = x @ w_t + bias,
    then sin(w0*y) unless is_last.  w_t is the nn.Linear weight already
    transposed to (in_f, out_f)."""
    return siren_mlp(x, [(w_t, bias)], w0=w0, last_is_linear=is_last,
                     tm=tm, compute_dtype=compute_dtype, interpret=interpret)


def init_siren_params(key, in_f, out_f, w0=30.0, is_first=False):
    """Matches SirenLayer.init_weights; weight stored pre-transposed (in_f, out_f).
    Bias keeps the default nn.Linear init U(-1/sqrt(in_f), 1/sqrt(in_f))."""
    kw, kb = jax.random.split(key)
    bound = (1.0 / in_f) if is_first else float(np.sqrt(6.0 / in_f) / w0)
    w_t = jax.random.uniform(kw, (in_f, out_f), dtype=jnp.float32,
                             minval=-bound, maxval=bound)
    b_bound = 1.0 / float(np.sqrt(in_f))
    bias = jax.random.uniform(kb, (out_f,), dtype=jnp.float32,
                              minval=-b_bound, maxval=b_bound)
    return w_t, bias


def siren_mlp_ref(x, params, *, w0, last_is_linear):
    """Pure-JAX reference implementing the original module math."""
    h = x
    L = len(params)
    for l, (w_t, b) in enumerate(params):
        y = jnp.dot(h, w_t, precision=jax.lax.Precision.HIGHEST) + b
        if not (last_is_linear and l == L - 1):
            y = jnp.sin(w0 * y)
        h = y
    return h


if __name__ == "__main__":
    key = jax.random.PRNGKey(0)
    k_x, k1, k2, k3 = jax.random.split(key, 4)

    # Small SIREN: 250 2-D coordinates -> 32 -> 32 -> 3 (last layer linear).
    # N=250 deliberately exercises the ragged (masked) last batch tile.
    N, in_f, hidden, out_f = 250, 2, 32, 3
    w0 = 30.0

    x = jax.random.uniform(k_x, (N, in_f), dtype=jnp.float32,
                           minval=-1.0, maxval=1.0)
    p1 = init_siren_params(k1, in_f, hidden, w0=w0, is_first=True)
    p2 = init_siren_params(k2, hidden, hidden, w0=w0)
    p3 = init_siren_params(k3, hidden, out_f, w0=w0)
    params = [p1, p2, p3]

    # --- single SirenLayer (the module itself), sin activation, f32 ---------
    out1 = jax.block_until_ready(
        siren_layer(x, p1[0], p1[1], w0=w0, is_last=False))
    ref1 = siren_mlp_ref(x, [p1], w0=w0, last_is_linear=False)
    np.testing.assert_allclose(np.asarray(out1), np.asarray(ref1),
                               rtol=1e-4, atol=1e-4)

    # --- fused 3-layer SIREN MLP in one pallas_call, f32 ---------------------
    out_mlp = jax.block_until_ready(
        siren_mlp(x, params, w0=w0, last_is_linear=True))
    ref_mlp = siren_mlp_ref(x, params, w0=w0, last_is_linear=True)
    np.testing.assert_allclose(np.asarray(out_mlp), np.asarray(ref_mlp),
                               rtol=1e-4, atol=1e-4)

    # --- fused MLP, bf16 MXU operands for hidden layers (layer 0 stays f32) --
    out_bf = jax.block_until_ready(
        siren_mlp(x, params, w0=w0, last_is_linear=True,
                  compute_dtype=jnp.bfloat16))
    np.testing.assert_allclose(np.asarray(out_bf), np.asarray(ref_mlp),
                               rtol=5e-2, atol=5e-2)

    print("KERNEL_OK")
</pallas_src>

<mosaic_0001>
module attributes {stable_mosaic.version = 11 : i64} {
  func.func @siren_mlp_kernel(%arg0: i32, %arg1: memref<128x2xf32, #tpu.memory_space<vmem>>, %arg2: memref<2x32xf32, #tpu.memory_space<vmem>>, %arg3: memref<1x32xf32, #tpu.memory_space<vmem>>, %arg4: memref<128x32xf32, #tpu.memory_space<vmem>>) attributes {dimension_semantics = [#tpu.dimension_semantics<parallel>], iteration_bounds = array<i64: 2>, scalar_prefetch = 0 : i64, scratch_operands = 0 : i64, tpu.core_type = #tpu.core_type<tc>, window_params = [{transform_indices = @transform_0, window_bounds = array<i64: 128, 2>}, {pipeline_mode = #tpu.pipeline_mode<synchronous>, transform_indices = @transform_1, window_bounds = array<i64: 2, 32>}, {pipeline_mode = #tpu.pipeline_mode<synchronous>, transform_indices = @transform_2, window_bounds = array<i64: 1, 32>}, {transform_indices = @transform_3, window_bounds = array<i64: 128, 32>}]} {
    %c0 = arith.constant 0 : index
    %c0_0 = arith.constant 0 : index
    %0 = vector.load %arg1[%c0, %c0_0] : memref<128x2xf32, #tpu.memory_space<vmem>>, vector<128x2xf32>
    %c0_1 = arith.constant 0 : index
    %c0_2 = arith.constant 0 : index
    %1 = vector.load %arg2[%c0_1, %c0_2] : memref<2x32xf32, #tpu.memory_space<vmem>>, vector<2x32xf32>
    %c0_3 = arith.constant 0 : index
    %c0_4 = arith.constant 0 : index
    %2 = vector.load %arg3[%c0_3, %c0_4] : memref<1x32xf32, #tpu.memory_space<vmem>>, vector<1x32xf32>
    %cst = arith.constant dense<0.000000e+00> : vector<128x32xf32>
    %3 = tpu.matmul %0, %1, %cst {dimension_numbers = #tpu.dot_dimension_numbers<[1], [0], [0], [1], [0, 0, 1, 1], [], []>} : vector<128x2xf32>, vector<2x32xf32>, vector<128x32xf32> -> vector<128x32xf32>
    %4 = vector.broadcast %2 : vector<1x32xf32> to vector<128x32xf32>
    %5 = arith.addf %3, %4 : vector<128x32xf32>
    %6 = math.sin %5 : vector<128x32xf32>
    %c0_5 = arith.constant 0 : index
    %c0_6 = arith.constant 0 : index
    %7 = vector.load %arg4[%c0_5, %c0_6] : memref<128x32xf32, #tpu.memory_space<vmem>>, vector<128x32xf32>
    tpu.vector_store %arg4[%c0_5, %c0_6], %6 {strides = array<i32>} : memref<128x32xf32, #tpu.memory_space<vmem>>, vector<128x32xf32>,
    return
  }
  func.func @transform_0(%arg0: i32) -> (i32, i32) {
    %c0_i32 = arith.constant 0 : i32
    %c0_i32_0 = arith.constant 0 : i32
    return %arg0, %c0_i32 : i32, i32
  }
  func.func @transform_1(%arg0: i32) -> (i32, i32) {
    %c0_i32 = arith.constant 0 : i32
    %c0_i32_0 = arith.constant 0 : i32
    %c0_i32_1 = arith.constant 0 : i32
    return %c0_i32, %c0_i32_0 : i32, i32
  }
  func.func @transform_2(%arg0: i32) -> (i32, i32) {
    %c0_i32 = arith.constant 0 : i32
    %c0_i32_0 = arith.constant 0 : i32
    %c0_i32_1 = arith.constant 0 : i32
    return %c0_i32, %c0_i32_0 : i32, i32
  }
  func.func @transform_3(%arg0: i32) -> (i32, i32) {
    %c0_i32 = arith.constant 0 : i32
    %c0_i32_0 = arith.constant 0 : i32
    return %arg0, %c0_i32 : i32, i32
  }
}

</mosaic_0001>

<llo_original>
// kernel: tpu_custom_call.1
$region0: #{tpu_custom_call.1}
  #allocation0 [shape = 'u32[]', space=smem, size = 0x4, offset = 0x4, fixed_abs, tag = 'smem constant byte address 0x4 - core index']
  #allocation1 [shape = 'u32[72,128]{1,0:T(1,128)}', space=vmem, size = 0x9000, scoped, tag = 'internal scratch']
  %s0 = inlined_call_operand.vmem [shape: f32[250,2], index: 0, kind: input, shape index: {}]
  %s1 = inlined_call_operand.vmem [shape: f32[2,32], index: 1, kind: input, shape index: {}]
  %s2 = inlined_call_operand.vmem [shape: f32[1,32], index: 2, kind: input, shape index: {}]
  %s3 = inlined_call_operand.vmem [shape: f32[250,32], index: 3, kind: output, shape index: {}]
  %s4 = sld [smem:[#allocation0]]
  $region45: #{tpu_custom_call.1} parent=0
    _
  %s6 = ssub.s32 1, %s4
  %s7 = scalar_select 0, %s6, %s4
  loop: start=0, step=1, limit=4
  $region2: #{tpu_custom_call.1} parent=0 // loop_pre_header
    _
  $region3: #{tpu_custom_call.1} parent=0 // loop_header
    %s9 = sphi 0, %s13
    %p10 = scmp.ge.s32.totalorder %s9, 4
    %s19 = sphi 0, %s21
    %s22 = sphi 0, %s19
    %s23 = sphi 0, %s22
    %s39 = sphi 0, %s23
    %s43 = sphi 0, %s43
    %s45 = sphi 0, %s43
    %s46 = sphi 0, %s45
    %s60 = sphi 0, %s46
    %s64 = sphi 0, %s64
    %s66 = sphi 0, %s64
    %s67 = sphi 0, %s66
    %s81 = sphi 0, %s67
    %s87 = sphi 0, %s89
    %s90 = sphi 0, %s87
    %s91 = sphi 0, %s90
    %s107 = sphi 0, %s91
  $region4: #{tpu_custom_call.1} parent=0 // loop_header_branch
    %12 = sbr.rel (%p10) target = $region8
  $region5: #{tpu_custom_call.1} parent=0 // loop_body
    %s14 = ssub.s32 %s9, 1
    %s15 = ssub.s32 %s9, 2
    %s16 = sadd.s32 %s9, 1
    %s17 = ssub.s32 %s9, %s16
    %p18 = scmp.eq.s32.totalorder %s17, 0
    %s20 = sadd.s32 %s19, 1
    %s21 = scalar_select %p18, %s19, %s20
    %p24 = pneg %p18
    %p25 = scmp.eq.s32.totalorder %s9, 1
    %p26 = por %p24, %p25
    %p27 = scmp.ne.s32.totalorder %s19, %s22
    %p28 = scmp.eq.s32.totalorder %s9, 0
    %p29 = por %p27, %p28
    %p30 = scmp.ne.s32.totalorder %s19, %s22
    %p31 = scmp.eq.s32.totalorder %s14, 1
    %p32 = por %p30, %p31
    %p33 = scmp.ne.s32.totalorder %s22, %s23
    %p34 = scmp.eq.s32.totalorder %s14, 0
    %p35 = por %p33, %p34
    %p36 = scmp.ne.s32.totalorder %s22, %s23
    %p37 = scmp.eq.s32.totalorder %s15, 1
    %p38 = por %p36, %p37
    %p40 = scmp.ne.s32.totalorder %s23, %s39
    %p41 = scmp.eq.s32.totalorder %s15, 0
    %p42 = por %p40, %p41
    %s44 = sadd.s32 %s43, 1
    %p47 = scmp.eq.s32.totalorder %s9, 1
    %p48 = scmp.ne.s32.totalorder %s43, %s45
    %p49 = scmp.eq.s32.totalorder %s9, 0
    %p50 = por %p48, %p49
    %p51 = scmp.ne.s32.totalorder %s43, %s45
    %p52 = scmp.eq.s32.totalorder %s14, 1
    %p53 = por %p51, %p52
    %p54 = scmp.ne.s32.totalorder %s45, %s46
    %p55 = scmp.eq.s32.totalorder %s14, 0
    %p56 = por %p54, %p55
    %p57 = scmp.ne.s32.totalorder %s45, %s46
    %p58 = scmp.eq.s32.totalorder %s15, 1
    %p59 = por %p57, %p58
    %p61 = scmp.ne.s32.totalorder %s46, %s60
    %p62 = scmp.eq.s32.totalorder %s15, 0
    %p63 = por %p61, %p62
    %s65 = sadd.s32 %s64, 1
    %p68 = scmp.eq.s32.totalorder %s9, 1
    %p69 = scmp.ne.s32.totalorder %s64, %s66
    %p70 = scmp.eq.s32.totalorder %s9, 0
    %p71 = por %p69, %p70
    %p72 = scmp.ne.s32.totalorder %s64, %s66
    %p73 = scmp.eq.s32.totalorder %s14, 1
    %p74 = por %p72, %p73
    %p75 = scmp.ne.s32.totalorder %s66, %s67
    %p76 = scmp.eq.s32.totalorder %s14, 0
    %p77 = por %p75, %p76
    %p78 = scmp.ne.s32.totalorder %s66, %s67
    %p79 = scmp.eq.s32.totalorder %s15, 1
    %p80 = por %p78, %p79
    %p82 = scmp.ne.s32.totalorder %s67, %s81
    %p83 = scmp.eq.s32.totalorder %s15, 0
    %p84 = por %p82, %p83
    %s85 = ssub.s32 %s9, %s16
    %p86 = scmp.eq.s32.totalorder %s85, 0
    %s88 = sadd.s32 %s87, 1
    %s89 = scalar_select %p86, %s87, %s88
    %p92 = pneg %p86
    %p93 = scmp.eq.s32.totalorder %s9, 1
    %p94 = por %p92, %p93
    %p95 = scmp.ne.s32.totalorder %s87, %s90
    %p96 = scmp.eq.s32.totalorder %s9, 0
    %p97 = por %p95, %p96
    %p98 = scmp.ne.s32.totalorder %s87, %s90
    %p99 = scmp.eq.s32.totalorder %s14, 1
    %p100 = por %p98, %p99
    %p101 = scmp.ne.s32.totalorder %s90, %s91
    %p102 = scmp.eq.s32.totalorder %s14, 0
    %p103 = por %p101, %p102
    %p104 = scmp.ne.s32.totalorder %s90, %s91
    %p105 = scmp.eq.s32.totalorder %s15, 1
    %p106 = por %p104, %p105
    %p108 = scmp.ne.s32.totalorder %s91, %s107
    %p109 = scmp.eq.s32.totalorder %s15, 0
    %p110 = por %p108, %p109
    %p111 = scmp.le.s32.totalorder 1, %s9
    %p112 = scmp.lt.s32.totalorder %s9, 3
    %p113 = pnand %p111, %p112
    %p114 = pneg %p113
    // Predicated region
    $region9: #{tpu_custom_call.1} parent=5 // pred_check
      _
    $region10: #{tpu_custom_call.1} parent=5 // pred_check_branch
      %116 = sbr.rel (%p113) target = $region12
    $region11: #{tpu_custom_call.1} parent=5 // pred_region
      %s117 = ssub.s32 %s9, 1
      // Predicated region
      $region13: #{tpu_custom_call.1} parent=11 // pred_check
        %p118 = pneg %p56
      $region14: #{tpu_custom_call.1} parent=11 // pred_check_branch
        %120 = sbr.rel (%p118) target = $region16
      $region15: #{tpu_custom_call.1} parent=11 // pred_region
        _
      $region16: #{tpu_custom_call.1} parent=11 // pred_fallthru
        _
      // Predicated region
      $region17: #{tpu_custom_call.1} parent=11 // pred_check
        %p121 = pneg %p77
      $region18: #{tpu_custom_call.1} parent=11 // pred_check_branch
        %123 = sbr.rel (%p121) target = $region20
      $region19: #{tpu_custom_call.1} parent=11 // pred_region
        _
      $region20: #{tpu_custom_call.1} parent=11 // pred_fallthru
        _
    $region12: #{tpu_custom_call.1} parent=5 // pred_fallthru
      _
    %p124 = scmp.lt.s32.totalorder %s9, 2
    // Predicated region
    $region21: #{tpu_custom_call.1} parent=5 // pred_check
      %p125 = pneg %p124
    $region22: #{tpu_custom_call.1} parent=5 // pred_check_branch
      %127 = sbr.rel (%p125) target = $region24
    $region23: #{tpu_custom_call.1} parent=5 // pred_region
      // Predicated region
      $region25: #{tpu_custom_call.1} parent=23 // pred_check
        %p128 = pneg %p29
      $region26: #{tpu_custom_call.1} parent=23 // pred_check_branch
        %130 = sbr.rel (%p128) target = $region28
      $region27: #{tpu_custom_call.1} parent=23 // pred_region
        %s131 = smul.u32 16, %s9
        %p132 = scmp.lt.s32.totalorder %s131, 31
        %s133 = scalar_select %p132, %s131, 31
        %s134 = smul.addr %s133, 8
        %s135 = scalar_lea.vmem %s0, %s134
        %s136 = smul.u32 16, %s9
      $region28: #{tpu_custom_call.1} parent=23 // pred_fallthru
        _
    $region24: #{tpu_custom_call.1} parent=5 // pred_fallthru
      _
    %p137 = scmp.le.s32.totalorder 1, %s9
    %p138 = scmp.lt.s32.totalorder %s9, 3
    %p139 = pnand %p137, %p138
    %p140 = pneg %p139
    // Predicated region
    $region29: #{tpu_custom_call.1} parent=5 // pred_check
      _
    $region30: #{tpu_custom_call.1} parent=5 // pred_check_branch
      %142 = sbr.rel (%p139) target = $region32
    $region31: #{tpu_custom_call.1} parent=5 // pred_region
      %s143 = ssub.s32 %s9, 1
      %s144 = smul.u32 16, %s14
      %p145 = scmp.lt.s32.totalorder %s144, 31
      %s146 = scalar_select %p145, %s144, 31
      %s147 = smul.addr %s146, 8
      %s148 = scalar_lea.vmem %s0, %s147
      %p149 = pneg %p35
      %p150 = pneg %p32
      %p151 = pneg %p56
      %p152 = pneg %p53
      %p153 = pneg %p77
      %p154 = pneg %p74
      %p155 = pneg %p103
      %p156 = pneg %p100
      %s157 = smul.u32 16, %s14
      %p158 = scmp.lt.s32.totalorder %s157, 31
      %s159 = scalar_select %p158, %s157, 31
      %s160 = smul.addr %s159, 8
      %s161 = scalar_lea.vmem %s3, %s160
      %s162 = smul.u32 16, %s14
      %p163 = scmp.lt.s32.totalorder %s162, 31
      %s164 = scalar_select %p163, %s162, 31
      %s165 = smul.addr %s164, 8
      %s166 = scalar_lea.vmem %s0, %s165
      %s167 = smul.u32 16, %s14
      %s168 = smul.u32 16, %s14
      %p169 = scmp.lt.s32.totalorder %s168, 31
      %s170 = scalar_select %p169, %s168, 31
      %s171 = smul.addr %s170, 8
      %s172 = scalar_lea.vmem %s3, %s171
      %s173 = smul.u32 16, %s14
      %v174 = vld [vmem:[%s166] sm:$0xff]
      %v175 = vld [vmem:[%s166 + $0x8] sm:$0xff]
      %v176 = vld [vmem:[%s166 + $0x10] sm:$0xff]
      %v177 = vld [vmem:[%s166 + $0x18] sm:$0xff]
      %v178 = vld [vmem:[%s166 + $0x20] sm:$0xff]
      %v179 = vld [vmem:[%s166 + $0x28] sm:$0xff]
      %v180 = vld [vmem:[%s166 + $0x30] sm:$0xff]
      %v181 = vld [vmem:[%s166 + $0x38] sm:$0xff]
      %v182 = vld [vmem:[%s166 + $0x40] sm:$0xff]
      %v183 = vld [vmem:[%s166 + $0x48] sm:$0xff]
      %v184 = vld [vmem:[%s166 + $0x50] sm:$0xff]
      %v185 = vld [vmem:[%s166 + $0x58] sm:$0xff]
      %v186 = vld [vmem:[%s166 + $0x60] sm:$0xff]
      %v187 = vld [vmem:[%s166 + $0x68] sm:$0xff]
      %v188 = vld [vmem:[%s166 + $0x70] sm:$0xff]
      %v189 = vld [vmem:[%s166 + $0x78] sm:$0xff]
      %v190 = vld [vmem:[%s1] sm:$0x3]
      %v191 = vld [vmem:[%s2] sm:$0x1]
      %v193 = vperm.slane %v191, 0
      %vm195 = vcmask 15360
      %v197 = vsel %vm195, %v174, 0
      %v200 = vsel %vm195, %v175, 0
      %v203 = vsel %vm195, %v176, 0
      %v206 = vsel %vm195, %v177, 0
      %v209 = vsel %vm195, %v178, 0
      %v212 = vsel %vm195, %v179, 0
      %v215 = vsel %vm195, %v180, 0
      %v218 = vsel %vm195, %v181, 0
      %v221 = vsel %vm195, %v182, 0
      %v224 = vsel %vm195, %v183, 0
      %v227 = vsel %vm195, %v184, 0
      %v230 = vsel %vm195, %v185, 0
      %v233 = vsel %vm195, %v186, 0
      %v236 = vsel %vm195, %v187, 0
      %v239 = vsel %vm195, %v188, 0
      %v242 = vsel %vm195, %v189, 0
      %vm244 = vcmask 1041408
      %v246 = vsel %vm244, %v190, 0
      %248 = vmatpush.msra.mxu0 0.0
      %249 = vmatpush.msra.mxu0 0.0
      %250 = vmatpush.msra.mxu0 0.0
      %251 = vmatpush.msra.mxu0 0.0
      %252 = vmatpush.msra.mxu0 0.0
      %253 = vmatpush.msra.mxu0 0.0
      %254 = vmatpush.msra.mxu0 0.0
      %255 = vmatpush.msra.mxu0 0.0
      %256 = vmatpush.msra.mxu0 0.0
      %257 = vmatpush.msra.mxu0 0.0
      %258 = vmatpush.msra.mxu0 0.0
      %259 = vmatpush.msra.mxu0 0.0
      %260 = vmatpush.msra.mxu0 0.0
      %261 = vmatpush.msra.mxu0 0.0
      %262 = vmatpush.msra.mxu0 0.0
      %263 = vmatpush.msra.mxu0 %v246
      %264 = vmatmul.f32.gmra.mxu0 %v197
      %v265 = vpop.f32.mrf.mxu0
      %v266 = vadd.f32 %v193, %v265
      %267 = vmatmul.f32.gmra.mxu0 %v200
      %v268 = vpop.f32.mrf.mxu0
      %v269 = vadd.f32 %v193, %v268
      %270 = vmatmul.f32.gmra.mxu0 %v203
      %v271 = vpop.f32.mrf.mxu0
      %v272 = vadd.f32 %v193, %v271
      %273 = vmatmul.f32.gmra.mxu0 %v206
      %v274 = vpop.f32.mrf.mxu0
      %v275 = vadd.f32 %v193, %v274
      %276 = vmatmul.f32.gmra.mxu0 %v209
      %v277 = vpop.f32.mrf.mxu0
      %v278 = vadd.f32 %v193, %v277
      %279 = vmatmul.f32.gmra.mxu0 %v212
      %v280 = vpop.f32.mrf.mxu0
      %v281 = vadd.f32 %v193, %v280
      %282 = vmatmul.f32.gmra.mxu0 %v215
      %v283 = vpop.f32.mrf.mxu0
      %v284 = vadd.f32 %v193, %v283
      %285 = vmatmul.f32.gmra.mxu0 %v218
      %v286 = vpop.f32.mrf.mxu0
      %v287 = vadd.f32 %v193, %v286
      %288 = vmatmul.f32.gmra.mxu0 %v221
      %v289 = vpop.f32.mrf.mxu0
      %v290 = vadd.f32 %v193, %v289
      %291 = vmatmul.f32.gmra.mxu0 %v224
      %v292 = vpop.f32.mrf.mxu0
      %v293 = vadd.f32 %v193, %v292
      %294 = vmatmul.f32.gmra.mxu0 %v227
      %v295 = vpop.f32.mrf.mxu0
      %v296 = vadd.f32 %v193, %v295
      %297 = vmatmul.f32.gmra.mxu0 %v230
      %v298 = vpop.f32.mrf.mxu0
      %v299 = vadd.f32 %v193, %v298
      %300 = vmatmul.f32.gmra.mxu0 %v233
      %v301 = vpop.f32.mrf.mxu0
      %v302 = vadd.f32 %v193, %v301
      %303 = vmatmul.f32.gmra.mxu0 %v236
      %v304 = vpop.f32.mrf.mxu0
      %v305 = vadd.f32 %v193, %v304
      %306 = vmatmul.f32.gmra.mxu0 %v239
      %v307 = vpop.f32.mrf.mxu0
      %v308 = vadd.f32 %v193, %v307
      %309 = vmatmul.f32.gmra.mxu0 %v242
      %v310 = vpop.f32.mrf.mxu0
      %v311 = vadd.f32 %v193, %v310
      %312 = vdwg.mxu0
      %v313 = vand.u32 2147483647, %v266
      %vm314 = vcmp.le.f32.partialorder %v313, 0.7853982
      %vm315 = vcmp.lt.s32.totalorder %v266, 0
      %v316 = vand.u32 %v266, 2139095040
      %v317 = vshrl.u32 %v316, 23
      %v318 = vsub.s32 %v317, 127
      %v319 = vand.u32 2147483647, %v266
      %v320 = vand.u32 %v319, 8388607
      %v321 = vor.u32 %v320, 8388608
      %v322 = vsub.s32 0, %v321
      %v323 = vadd.s32 %v318, 1
      %vm324 = vcmp.gt.s32.totalorder %v323, 0
      %v325 = vsel %vm324, %v323, 0
      %v326 = vshrl.u32 %v325, 5
      %v327 = vand.u32 %v325, 31
      %v328 = vsub.s32 32, %v327
      %v329 = vshrl.u32 683565275, %v328
      %v330 = vshll.u32 683565275, %v327
      %v331 = vshrl.u32 2475754826, %v328
      %v332 = vor.u32 %v330, %v331
      %v333 = vshll.u32 2475754826, %v327
      %v334 = vshrl.u32 2131351028, %v328
      %v335 = vor.u32 %v333, %v334
      %v336 = vshll.u32 2131351028, %v327
      %v337 = vshrl.u32 2102212464, %v328
      %v338 = vor.u32 %v336, %v337
      %v339 = vshll.u32 2102212464, %v327
      %v340 = vshrl.u32 920167782, %v328
      %v341 = vor.u32 %v339, %v340
      %v342 = vshll.u32 920167782, %v327
      %v343 = vshrl.u32 1326507024, %v328
      %v344 = vor.u32 %v342, %v343
      %vm345 = vcmp.lt.s32.totalorder %v326, 1
      %vm346 = vcmp.lt.s32.totalorder %v326, 2
      %vm347 = vcmp.lt.s32.totalorder %v326, 3
      %vm348 = vcmp.lt.s32.totalorder %v326, 4
      %v349 = vsel %vm345, %v329, %v332
      %v350 = vsel %vm348, %v338, 2102212464
      %v351 = vsel %vm347, %v335, %v350
      %v352 = vsel %vm346, %v349, %v351
      %v353 = vsel %vm345, %v332, %v335
      %v354 = vsel %vm348, %v341, 920167782
      %v355 = vsel %vm347, %v338, %v354
      %v356 = vsel %vm346, %v353, %v355
      %v357 = vsel %vm345, %v335, %v338
      %v358 = vsel %vm348, %v344, 1326507024
      %v359 = vsel %vm347, %v341, %v358
      %v360 = vsel %vm346, %v357, %v359
      %v361 = vshll.u32 %v321, 8
      %v362 = vand.u32 %v361, 65535
      %v363 = vshrl.u32 %v361, 16
      %v364 = vand.u32 %v360, 65535
      %v365 = vshrl.u32 %v360, 16
      %v366 = vmul.u32 %v362, %v364
      %v367 = vmul.u32 %v362, %v365
      %v368 = vmul.u32 %v363, %v364
      %v369 = vmul.u32 %v363, %v365
      %v370 = vshll.u32 %v367, 16
      %v371 = vshrl.u32 %v367, 16
      %v372 = vshll.u32 %v368, 16
      %v373 = vshrl.u32 %v368, 16
      %vm374 = vc.u32 %v366, %v370
      %v375 = vsel %vm374, 1, 0
      %v376 = vadd.s32 %v366, %v370
      %v377 = vadd.s32 %v369, %v375
      %vm378 = vc.u32 %v376, %v372
      %v379 = vsel %vm378, 1, 0
      %v380 = vadd.s32 %v376, %v372
      %v381 = vadd.s32 %v377, %v379
      %v382 = vadd.s32 %v381, %v371
      %v383 = vadd.s32 %v382, %v373
      %v384 = vand.u32 %v361, 65535
      %v385 = vshrl.u32 %v361, 16
      %v386 = vand.u32 %v356, 65535
      %v387 = vshrl.u32 %v356, 16
      %v388 = vmul.u32 %v384, %v386
      %v389 = vmul.u32 %v384, %v387
      %v390 = vmul.u32 %v385, %v386
      %v391 = vmul.u32 %v385, %v387
      %v392 = vshll.u32 %v389, 16
      %v393 = vshrl.u32 %v389, 16
      %v394 = vshll.u32 %v390, 16
      %v395 = vshrl.u32 %v390, 16
      %vm396 = vc.u32 %v388, %v392
      %v397 = vsel %vm396, 1, 0
      %v398 = vadd.s32 %v388, %v392
      %v399 = vadd.s32 %v391, %v397
      %vm400 = vc.u32 %v398, %v394
      %v401 = vsel %vm400, 1, 0
      %v402 = vadd.s32 %v398, %v394
      %v403 = vadd.s32 %v399, %v401
      %v404 = vadd.s32 %v403, %v393
      %v405 = vadd.s32 %v404, %v395
      %v406 = vmul.u32 %v361, %v352
      %v407 = vadd.s32 %v383, %v402
      %vm408 = vc.u32 %v383, %v402
      %v409 = vadd.s32 %v405, 1
      %v410 = vsel %vm408, %v409, %v405
      %v411 = vadd.s32 %v406, %v410
      %v412 = vadd.s32 %v411, 536870912
      %v413 = vshrl.u32 %v412, 30
      %v414 = vshll.u32 %v413, 30
      %v415 = vsub.s32 %v411, %v414
      %vm416 = vcmp.lt.s32.totalorder %v415, 0
      %v417 = vsub.s32 0, %v415
      %v418 = vsel %vm416, %v417, %v415
      %v419 = vclz %v418
      %v420 = vsub.s32 %v419, 2
      %vm421 = vcmp.gt.s32.totalorder 0, %v420
      %v422 = vsel %vm421, 0, %v420
      %v423 = vsub.s32 32, %v422
      %v424 = vshll.u32 %v415, %v422
      %v425 = vshrl.u32 %v407, %v423
      %v426 = vor.u32 %v424, %v425
      %v427 = vsub.s32 4294967266, %v422
      %v428 = vadd.s32 %v427, 127
      %v429 = vshll.u32 %v428, 23
      %v430 = vor.u32 4788187, %v429
      %v431 = vand.u32 2147483647, %v430
      %v433 = vcvt.s32.f32 %v426
      %v434 = vmul.f32 %v433, %v431
      %v435 = vxor.u32 %v434, 2147483648
      %v436 = vsel %vm315, %v435, %v434
      %v437 = vsub.s32 4, %v413
      %v438 = vsel %vm315, %v437, %v413
      %v439 = vsel %vm314, %v266, %v436
      %v440 = vsel %vm314, 0, %v438
      %v441 = vmul.f32 %v439, %v439
      %v442 = vmul.f32 %v441, -0.001358992
      %v443 = vadd.f32 %v442, 0.041655596
      %v444 = vmul.f32 %v441, %v443
      %v445 = vadd.f32 %v444, -0.4999988
      %v446 = vmul.f32 %v441, %v445
      %v447 = vadd.f32 1.0, %v446
      %v448 = vmul.f32 %v439, %v439
      %v449 = vmul.f32 %v448, -0.00019511016
      %v450 = vadd.f32 %v449, 0.008332121
      %v451 = vmul.f32 %v448, %v450
      %v452 = vadd.f32 %v451, -0.16666654
      %v453 = vmul.f32 %v448, %v452
      %v454 = vadd.f32 %v453, 1.0
      %v455 = vmul.f32 %v454, %v439
      %vm456 = vweird.f32 %v266
      %v457 = vadd.s32 %v440, 3
      %v458 = vand.u32 %v457, 3
      %vm459 = vcmp.lt.s32.totalorder %v458, 2
      %vm460 = vcmp.eq.s32.totalorder %v458, 0
      %v461 = vxor.u32 %v455, 2147483648
      %v462 = vsel %vm460, %v447, %v461
      %vm463 = vcmp.eq.s32.totalorder %v458, 2
      %v464 = vxor.u32 %v447, 2147483648
      %v465 = vsel %vm463, %v464, %v455
      %v466 = vsel %vm459, %v462, %v465
      %v467 = vsel %vm456, nan, %v466
      %v468 = vand.u32 2147483647, %v269
      %vm469 = vcmp.le.f32.partialorder %v468, 0.7853982
      %vm470 = vcmp.lt.s32.totalorder %v269, 0
      %v471 = vand.u32 %v269, 2139095040
      %v472 = vshrl.u32 %v471, 23
      %v473 = vsub.s32 %v472, 127
      %v474 = vand.u32 2147483647, %v269
      %v475 = vand.u32 %v474, 8388607
      %v476 = vor.u32 %v475, 8388608
      %v477 = vsub.s32 0, %v476
      %v478 = vadd.s32 %v473, 1
      %vm479 = vcmp.gt.s32.totalorder %v478, 0
      %v480 = vsel %vm479, %v478, 0
      %v481 = vshrl.u32 %v480, 5
      %v482 = vand.u32 %v480, 31
      %v483 = vsub.s32 32, %v482
      %v484 = vshrl.u32 683565275, %v483
      %v485 = vshll.u32 683565275, %v482
      %v486 = vshrl.u32 2475754826, %v483
      %v487 = vor.u32 %v485, %v486
      %v488 = vshll.u32 2475754826, %v482
      %v489 = vshrl.u32 2131351028, %v483
      %v490 = vor.u32 %v488, %v489
      %v491 = vshll.u32 2131351028, %v482
      %v492 = vshrl.u32 2102212464, %v483
      %v493 = vor.u32 %v491, %v492
      %v494 = vshll.u32 2102212464, %v482
      %v495 = vshrl.u32 920167782, %v483
      %v496 = vor.u32 %v494, %v495
      %v497 = vshll.u32 920167782, %v482
      %v498 = vshrl.u32 1326507024, %v483
      %v499 = vor.u32 %v497, %v498
      %vm500 = vcmp.lt.s32.totalorder %v481, 1
      %vm501 = vcmp.lt.s32.totalorder %v481, 2
      %vm502 = vcmp.lt.s32.totalorder %v481, 3
      %vm503 = vcmp.lt.s32.totalorder %v481, 4
      %v504 = vsel %vm500, %v484, %v487
      %v505 = vsel %vm503, %v493, 2102212464
      %v506 = vsel %vm502, %v490, %v505
      %v507 = vsel %vm501, %v504, %v506
      %v508 = vsel %vm500, %v487, %v490
      %v509 = vsel %vm503, %v496, 920167782
      %v510 = vsel %vm502, %v493, %v509
      %v511 = vsel %vm501, %v508, %v510
      %v512 = vsel %vm500, %v490, %v493
      %v513 = vsel %vm503, %v499, 1326507024
      %v514 = vsel %vm502, %v496, %v513
      %v515 = vsel %vm501, %v512, %v514
      %v516 = vshll.u32 %v476, 8
      %v517 = vand.u32 %v516, 65535
      %v518 = vshrl.u32 %v516, 16
      %v519 = vand.u32 %v515, 65535
      %v520 = vshrl.u32 %v515, 16
      %v521 = vmul.u32 %v517, %v519
      %v522 = vmul.u32 %v517, %v520
      %v523 = vmul.u32 %v518, %v519
      %v524 = vmul.u32 %v518, %v520
      %v525 = vshll.u32 %v522, 16
      %v526 = vshrl.u32 %v522, 16
      %v527 = vshll.u32 %v523, 16
      %v528 = vshrl.u32 %v523, 16
      %vm529 = vc.u32 %v521, %v525
      %v530 = vsel %vm529, 1, 0
      %v531 = vadd.s32 %v521, %v525
      %v532 = vadd.s32 %v524, %v530
      %vm533 = vc.u32 %v531, %v527
      %v534 = vsel %vm533, 1, 0
      %v535 = vadd.s32 %v531, %v527
      %v536 = vadd.s32 %v532, %v534
      %v537 = vadd.s32 %v536, %v526
      %v538 = vadd.s32 %v537, %v528
      %v539 = vand.u32 %v516, 65535
      %v540 = vshrl.u32 %v516, 16
      %v541 = vand.u32 %v511, 65535
      %v542 = vshrl.u32 %v511, 16
      %v543 = vmul.u32 %v539, %v541
      %v544 = vmul.u32 %v539, %v542
      %v545 = vmul.u32 %v540, %v541
      %v546 = vmul.u32 %v540, %v542
      %v547 = vshll.u32 %v544, 16
      %v548 = vshrl.u32 %v544, 16
      %v549 = vshll.u32 %v545, 16
      %v550 = vshrl.u32 %v545, 16
      %vm551 = vc.u32 %v543, %v547
      %v552 = vsel %vm551, 1, 0
      %v553 = vadd.s32 %v543, %v547
      %v554 = vadd.s32 %v546, %v552
      %vm555 = vc.u32 %v553, %v549
      %v556 = vsel %vm555, 1, 0
      %v557 = vadd.s32 %v553, %v549
      %v558 = vadd.s32 %v554, %v556
      %v559 = vadd.s32 %v558, %v548
      %v560 = vadd.s32 %v559, %v550
      %v561 = vmul.u32 %v516, %v507
      %v562 = vadd.s32 %v538, %v557
      %vm563 = vc.u32 %v538, %v557
      %v564 = vadd.s32 %v560, 1
      %v565 = vsel %vm563, %v564, %v560
      %v566 = vadd.s32 %v561, %v565
      %v567 = vadd.s32 %v566, 536870912
      %v568 = vshrl.u32 %v567, 30
      %v569 = vshll.u32 %v568, 30
      %v570 = vsub.s32 %v566, %v569
      %vm571 = vcmp.lt.s32.totalorder %v570, 0
      %v572 = vsub.s32 0, %v570
      %v573 = vsel %vm571, %v572, %v570
      %v574 = vclz %v573
      %v575 = vsub.s32 %v574, 2
      %vm576 = vcmp.gt.s32.totalorder 0, %v575
      %v577 = vsel %vm576, 0, %v575
      %v578 = vsub.s32 32, %v577
      %v579 = vshll.u32 %v570, %v577
      %v580 = vshrl.u32 %v562, %v578
      %v581 = vor.u32 %v579, %v580
      %v582 = vsub.s32 4294967266, %v577
      %v583 = vadd.s32 %v582, 127
      %v584 = vshll.u32 %v583, 23
      %v585 = vor.u32 4788187, %v584
      %v586 = vand.u32 2147483647, %v585
      %v588 = vcvt.s32.f32 %v581
      %v589 = vmul.f32 %v588, %v586
      %v590 = vxor.u32 %v589, 2147483648
      %v591 = vsel %vm470, %v590, %v589
      %v592 = vsub.s32 4, %v568
      %v593 = vsel %vm470, %v592, %v568
      %v594 = vsel %vm469, %v269, %v591
      %v595 = vsel %vm469, 0, %v593
      %v596 = vmul.f32 %v594, %v594
      %v597 = vmul.f32 %v596, -0.001358992
      %v598 = vadd.f32 %v597, 0.041655596
      %v599 = vmul.f32 %v596, %v598
      %v600 = vadd.f32 %v599, -0.4999988
      %v601 = vmul.f32 %v596, %v600
      %v602 = vadd.f32 1.0, %v601
      %v603 = vmul.f32 %v594, %v594
      %v604 = vmul.f32 %v603, -0.00019511016
      %v605 = vadd.f32 %v604, 0.008332121
      %v606 = vmul.f32 %v603, %v605
      %v607 = vadd.f32 %v606, -0.16666654
      %v608 = vmul.f32 %v603, %v607
      %v609 = vadd.f32 %v608, 1.0
      %v610 = vmul.f32 %v609, %v594
      %vm611 = vweird.f32 %v269
      %v612 = vadd.s32 %v595, 3
      %v613 = vand.u32 %v612, 3
      %vm614 = vcmp.lt.s32.totalorder %v613, 2
      %vm615 = vcmp.eq.s32.totalorder %v613, 0
      %v616 = vxor.u32 %v610, 2147483648
      %v617 = vsel %vm615, %v602, %v616
      %vm618 = vcmp.eq.s32.totalorder %v613, 2
      %v619 = vxor.u32 %v602, 2147483648
      %v620 = vsel %vm618, %v619, %v610
      %v621 = vsel %vm614, %v617, %v620
      %v622 = vsel %vm611, nan, %v621
      %v623 = vand.u32 2147483647, %v272
      %vm624 = vcmp.le.f32.partialorder %v623, 0.7853982
      %vm625 = vcmp.lt.s32.totalorder %v272, 0
      %v626 = vand.u32 %v272, 2139095040
      %v627 = vshrl.u32 %v626, 23
      %v628 = vsub.s32 %v627, 127
      %v629 = vand.u32 2147483647, %v272
      %v630 = vand.u32 %v629, 8388607
      %v631 = vor.u32 %v630, 8388608
      %v632 = vsub.s32 0, %v631
      %v633 = vadd.s32 %v628, 1
      %vm634 = vcmp.gt.s32.totalorder %v633, 0
      %v635 = vsel %vm634, %v633, 0
      %v636 = vshrl.u32 %v635, 5
      %v637 = vand.u32 %v635, 31
      %v638 = vsub.s32 32, %v637
      %v639 = vshrl.u32 683565275, %v638
      %v640 = vshll.u32 683565275, %v637
      %v641 = vshrl.u32 2475754826, %v638
      %v642 = vor.u32 %v640, %v641
      %v643 = vshll.u32 2475754826, %v637
      %v644 = vshrl.u32 2131351028, %v638
      %v645 = vor.u32 %v643, %v644
      %v646 = vshll.u32 2131351028, %v637
      %v647 = vshrl.u32 2102212464, %v638
      %v648 = vor.u32 %v646, %v647
      %v649 = vshll.u32 2102212464, %v637
      %v650 = vshrl.u32 920167782, %v638
      %v651 = vor.u32 %v649, %v650
      %v652 = vshll.u32 920167782, %v637
      %v653 = vshrl.u32 1326507024, %v638
      %v654 = vor.u32 %v652, %v653
      %vm655 = vcmp.lt.s32.totalorder %v636, 1
      %vm656 = vcmp.lt.s32.totalorder %v636, 2
      %vm657 = vcmp.lt.s32.totalorder %v636, 3
      %vm658 = vcmp.lt.s32.totalorder %v636, 4
      %v659 = vsel %vm655, %v639, %v642
      %v660 = vsel %vm658, %v648, 2102212464
      %v661 = vsel %vm657, %v645, %v660
      %v662 = vsel %vm656, %v659, %v661
      %v663 = vsel %vm655, %v642, %v645
      %v664 = vsel %vm658, %v651, 920167782
      %v665 = vsel %vm657, %v648, %v664
      %v666 = vsel %vm656, %v663, %v665
      %v667 = vsel %vm655, %v645, %v648
      %v668 = vsel %vm658, %v654, 1326507024
      %v669 = vsel %vm657, %v651, %v668
      %v670 = vsel %vm656, %v667, %v669
      %v671 = vshll.u32 %v631, 8
      %v672 = vand.u32 %v671, 65535
      %v673 = vshrl.u32 %v671, 16
      %v674 = vand.u32 %v670, 65535
      %v675 = vshrl.u32 %v670, 16
      %v676 = vmul.u32 %v672, %v674
      %v677 = vmul.u32 %v672, %v675
      %v678 = vmul.u32 %v673, %v674
      %v679 = vmul.u32 %v673, %v675
      %v680 = vshll.u32 %v677, 16
      %v681 = vshrl.u32 %v677, 16
      %v682 = vshll.u32 %v678, 16
      %v683 = vshrl.u32 %v678, 16
      %vm684 = vc.u32 %v676, %v680
      %v685 = vsel %vm684, 1, 0
      %v686 = vadd.s32 %v676, %v680
      %v687 = vadd.s32 %v679, %v685
      %vm688 = vc.u32 %v686, %v682
      %v689 = vsel %vm688, 1, 0
      %v690 = vadd.s32 %v686, %v682
      %v691 = vadd.s32 %v687, %v689
      %v692 = vadd.s32 %v691, %v681
      %v693 = vadd.s32 %v692, %v683
      %v694 = vand.u32 %v671, 65535
      %v695 = vshrl.u32 %v671, 16
      %v696 = vand.u32 %v666, 65535
      %v697 = vshrl.u32 %v666, 16
      %v698 = vmul.u32 %v694, %v696
      %v699 = vmul.u32 %v694, %v697
      %v700 = vmul.u32 %v695, %v696
      %v701 = vmul.u32 %v695, %v697
      %v702 = vshll.u32 %v699, 16
      %v703 = vshrl.u32 %v699, 16
      %v704 = vshll.u32 %v700, 16
      %v705 = vshrl.u32 %v700, 16
      %vm706 = vc.u32 %v698, %v702
      %v707 = vsel %vm706, 1, 0
      %v708 = vadd.s32 %v698, %v702
      %v709 = vadd.s32 %v701, %v707
      %vm710 = vc.u32 %v708, %v704
      %v711 = vsel %vm710, 1, 0
      %v712 = vadd.s32 %v708, %v704
      %v713 = vadd.s32 %v709, %v711
      %v714 = vadd.s32 %v713, %v703
      %v715 = vadd.s32 %v714, %v705
      %v716 = vmul.u32 %v671, %v662
      %v717 = vadd.s32 %v693, %v712
      %vm718 = vc.u32 %v693, %v712
      %v719 = vadd.s32 %v715, 1
      %v720 = vsel %vm718, %v719, %v715
      %v721 = vadd.s32 %v716, %v720
      %v722 = vadd.s32 %v721, 536870912
      %v723 = vshrl.u32 %v722, 30
      %v724 = vshll.u32 %v723, 30
      %v725 = vsub.s32 %v721, %v724
      %vm726 = vcmp.lt.s32.totalorder %v725, 0
      %v727 = vsub.s32 0, %v725
      %v728 = vsel %vm726, %v727, %v725
      %v729 = vclz %v728
      %v730 = vsub.s32 %v729, 2
      %vm731 = vcmp.gt.s32.totalorder 0, %v730
      %v732 = vsel %vm731, 0, %v730
      %v733 = vsub.s32 32, %v732
      %v734 = vshll.u32 %v725, %v732
      %v735 = vshrl.u32 %v717, %v733
      %v736 = vor.u32 %v734, %v735
      %v737 = vsub.s32 4294967266, %v732
      %v738 = vadd.s32 %v737, 127
      %v739 = vshll.u32 %v738, 23
      %v740 = vor.u32 4788187, %v739
      %v741 = vand.u32 2147483647, %v740
      %v743 = vcvt.s32.f32 %v736
      %v744 = vmul.f32 %v743, %v741
      %v745 = vxor.u32 %v744, 2147483648
      %v746 = vsel %vm625, %v745, %v744
      %v747 = vsub.s32 4, %v723
      %v748 = vsel %vm625, %v747, %v723
      %v749 = vsel %vm624, %v272, %v746
      %v750 = vsel %vm624, 0, %v748
      %v751 = vmul.f32 %v749, %v749
      %v752 = vmul.f32 %v751, -0.001358992
      %v753 = vadd.f32 %v752, 0.041655596
      %v754 = vmul.f32 %v751, %v753
      %v755 = vadd.f32 %v754, -0.4999988
      %v756 = vmul.f32 %v751, %v755
      %v757 = vadd.f32 1.0, %v756
      %v758 = vmul.f32 %v749, %v749
      %v759 = vmul.f32 %v758, -0.00019511016
      %v760 = vadd.f32 %v759, 0.008332121
      %v761 = vmul.f32 %v758, %v760
      %v762 = vadd.f32 %v761, -0.16666654
      %v763 = vmul.f32 %v758, %v762
      %v764 = vadd.f32 %v763, 1.0
      %v765 = vmul.f32 %v764, %v749
      %vm766 = vweird.f32 %v272
      %v767 = vadd.s32 %v750, 3
      %v768 = vand.u32 %v767, 3
      %vm769 = vcmp.lt.s32.totalorder %v768, 2
      %vm770 = vcmp.eq.s32.totalorder %v768, 0
      %v771 = vxor.u32 %v765, 2147483648
      %v772 = vsel %vm770, %v757, %v771
      %vm773 = vcmp.eq.s32.totalorder %v768, 2
      %v774 = vxor.u32 %v757, 2147483648
      %v775 = vsel %vm773, %v774, %v765
      %v776 = vsel %vm769, %v772, %v775
      %v777 = vsel %vm766, nan, %v776
      %v778 = vand.u32 2147483647, %v275
      %vm779 = vcmp.le.f32.partialorder %v778, 0.7853982
      %vm780 = vcmp.lt.s32.totalorder %v275, 0
      %v781 = vand.u32 %v275, 2139095040
      %v782 = vshrl.u32 %v781, 23
      %v783 = vsub.s32 %v782, 127
      %v784 = vand.u32 2147483647, %v275
      %v785 = vand.u32 %v784, 8388607
      %v786 = vor.u32 %v785, 8388608
      %v787 = vsub.s32 0, %v786
      %v788 = vadd.s32 %v783, 1
      %vm789 = vcmp.gt.s32.totalorder %v788, 0
      %v790 = vsel %vm789, %v788, 0
      %v791 = vshrl.u32 %v790, 5
      %v792 = vand.u32 %v790, 31
      %v793 = vsub.s32 32, %v792
      %v794 = vshrl.u32 683565275, %v793
      %v795 = vshll.u32 683565275, %v792
      %v796 = vshrl.u32 2475754826, %v793
      %v797 = vor.u32 %v795, %v796
      %v798 = vshll.u32 2475754826, %v792
      %v799 = vshrl.u32 2131351028, %v793
      %v800 = vor.u32 %v798, %v799
      %v801 = vshll.u32 2131351028, %v792
      %v802 = vshrl.u32 2102212464, %v793
      %v803 = vor.u32 %v801, %v802
      %v804 = vshll.u32 2102212464, %v792
      %v805 = vshrl.u32 920167782, %v793
      %v806 = vor.u32 %v804, %v805
      %v807 = vshll.u32 920167782, %v792
      %v808 = vshrl.u32 1326507024, %v793
      %v809 = vor.u32 %v807, %v808
      %vm810 = vcmp.lt.s32.totalorder %v791, 1
      %vm811 = vcmp.lt.s32.totalorder %v791, 2
      %vm812 = vcmp.lt.s32.totalorder %v791, 3
      %vm813 = vcmp.lt.s32.totalorder %v791, 4
      %v814 = vsel %vm810, %v794, %v797
      %v815 = vsel %vm813, %v803, 2102212464
      %v816 = vsel %vm812, %v800, %v815
      %v817 = vsel %vm811, %v814, %v816
      %v818 = vsel %vm810, %v797, %v800
      %v819 = vsel %vm813, %v806, 920167782
      %v820 = vsel %vm812, %v803, %v819
      %v821 = vsel %vm811, %v818, %v820
      %v822 = vsel %vm810, %v800, %v803
      %v823 = vsel %vm813, %v809, 1326507024
      %v824 = vsel %vm812, %v806, %v823
      %v825 = vsel %vm811, %v822, %v824
      %v826 = vshll.u32 %v786, 8
      %v827 = vand.u32 %v826, 65535
      %v828 = vshrl.u32 %v826, 16
      %v829 = vand.u32 %v825, 65535
      %v830 = vshrl.u32 %v825, 16
      %v831 = vmul.u32 %v827, %v829
      %v832 = vmul.u32 %v827, %v830
      %v833 = vmul.u32 %v828, %v829
      %v834 = vmul.u32 %v828, %v830
      %v835 = vshll.u32 %v832, 16
      %v836 = vshrl.u32 %v832, 16
      %v837 = vshll.u32 %v833, 16
      %v838 = vshrl.u32 %v833, 16
      %vm839 = vc.u32 %v831, %v835
      %v840 = vsel %vm839, 1, 0
      %v841 = vadd.s32 %v831, %v835
      %v842 = vadd.s32 %v834, %v840
      %vm843 = vc.u32 %v841, %v837
      %v844 = vsel %vm843, 1, 0
      %v845 = vadd.s32 %v841, %v837
      %v846 = vadd.s32 %v842, %v844
      %v847 = vadd.s32 %v846, %v836
      %v848 = vadd.s32 %v847, %v838
      %v849 = vand.u32 %v826, 65535
      %v850 = vshrl.u32 %v826, 16
      %v851 = vand.u32 %v821, 65535
      %v852 = vshrl.u32 %v821, 16
      %v853 = vmul.u32 %v849, %v851
      %v854 = vmul.u32 %v849, %v852
      %v855 = vmul.u32 %v850, %v851
      %v856 = vmul.u32 %v850, %v852
      %v857 = vshll.u32 %v854, 16
      %v858 = vshrl.u32 %v854, 16
      %v859 = vshll.u32 %v855, 16
      %v860 = vshrl.u32 %v855, 16
      %vm861 = vc.u32 %v853, %v857
      %v862 = vsel %vm861, 1, 0
      %v863 = vadd.s32 %v853, %v857
      %v864 = vadd.s32 %v856, %v862
      %vm865 = vc.u32 %v863, %v859
      %v866 = vsel %vm865, 1, 0
      %v867 = vadd.s32 %v863, %v859
      %v868 = vadd.s32 %v864, %v866
      %v869 = vadd.s32 %v868, %v858
      %v870 = vadd.s32 %v869, %v860
      %v871 = vmul.u32 %v826, %v817
      %v872 = vadd.s32 %v848, %v867
      %vm873 = vc.u32 %v848, %v867
      %v874 = vadd.s32 %v870, 1
      %v875 = vsel %vm873, %v874, %v870
      %v876 = vadd.s32 %v871, %v875
      %v877 = vadd.s32 %v876, 536870912
      %v878 = vshrl.u32 %v877, 30
      %v879 = vshll.u32 %v878, 30
      %v880 = vsub.s32 %v876, %v879
      %vm881 = vcmp.lt.s32.totalorder %v880, 0
      %v882 = vsub.s32 0, %v880
      %v883 = vsel %vm881, %v882, %v880
      %v884 = vclz %v883
      %v885 = vsub.s32 %v884, 2
      %vm886 = vcmp.gt.s32.totalorder 0, %v885
      %v887 = vsel %vm886, 0, %v885
      %v888 = vsub.s32 32, %v887
      %v889 = vshll.u32 %v880, %v887
      %v890 = vshrl.u32 %v872, %v888
      %v891 = vor.u32 %v889, %v890
      %v892 = vsub.s32 4294967266, %v887
      %v893 = vadd.s32 %v892, 127
      %v894 = vshll.u32 %v893, 23
      %v895 = vor.u32 4788187, %v894
      %v896 = vand.u32 2147483647, %v895
      %v898 = vcvt.s32.f32 %v891
      %v899 = vmul.f32 %v898, %v896
      %v900 = vxor.u32 %v899, 2147483648
      %v901 = vsel %vm780, %v900, %v899
      %v902 = vsub.s32 4, %v878
      %v903 = vsel %vm780, %v902, %v878
      %v904 = vsel %vm779, %v275, %v901
      %v905 = vsel %vm779, 0, %v903
      %v906 = vmul.f32 %v904, %v904
      %v907 = vmul.f32 %v906, -0.001358992
      %v908 = vadd.f32 %v907, 0.041655596
      %v909 = vmul.f32 %v906, %v908
      %v910 = vadd.f32 %v909, -0.4999988
      %v911 = vmul.f32 %v906, %v910
      %v912 = vadd.f32 1.0, %v911
      %v913 = vmul.f32 %v904, %v904
      %v914 = vmul.f32 %v913, -0.00019511016
      %v915 = vadd.f32 %v914, 0.008332121
      %v916 = vmul.f32 %v913, %v915
      %v917 = vadd.f32 %v916, -0.16666654
      %v918 = vmul.f32 %v913, %v917
      %v919 = vadd.f32 %v918, 1.0
      %v920 = vmul.f32 %v919, %v904
      %vm921 = vweird.f32 %v275
      %v922 = vadd.s32 %v905, 3
      %v923 = vand.u32 %v922, 3
      %vm924 = vcmp.lt.s32.totalorder %v923, 2
      %vm925 = vcmp.eq.s32.totalorder %v923, 0
      %v926 = vxor.u32 %v920, 2147483648
      %v927 = vsel %vm925, %v912, %v926
      %vm928 = vcmp.eq.s32.totalorder %v923, 2
      %v929 = vxor.u32 %v912, 2147483648
      %v930 = vsel %vm928, %v929, %v920
      %v931 = vsel %vm924, %v927, %v930
      %v932 = vsel %vm921, nan, %v931
      %v933 = vand.u32 2147483647, %v278
      %vm934 = vcmp.le.f32.partialorder %v933, 0.7853982
      %vm935 = vcmp.lt.s32.totalorder %v278, 0
      %v936 = vand.u32 %v278, 2139095040
      %v937 = vshrl.u32 %v936, 23
      %v938 = vsub.s32 %v937, 127
      %v939 = vand.u32 2147483647, %v278
      %v940 = vand.u32 %v939, 8388607
      %v941 = vor.u32 %v940, 8388608
      %v942 = vsub.s32 0, %v941
      %v943 = vadd.s32 %v938, 1
      %vm944 = vcmp.gt.s32.totalorder %v943, 0
      %v945 = vsel %vm944, %v943, 0
      %v946 = vshrl.u32 %v945, 5
      %v947 = vand.u32 %v945, 31
      %v948 = vsub.s32 32, %v947
      %v949 = vshrl.u32 683565275, %v948
      %v950 = vshll.u32 683565275, %v947
      %v951 = vshrl.u32 2475754826, %v948
      %v952 = vor.u32 %v950, %v951
      %v953 = vshll.u32 2475754826, %v947
      %v954 = vshrl.u32 2131351028, %v948
      %v955 = vor.u32 %v953, %v954
      %v956 = vshll.u32 2131351028, %v947
      %v957 = vshrl.u32 2102212464, %v948
      %v958 = vor.u32 %v956, %v957
      %v959 = vshll.u32 2102212464, %v947
      %v960 = vshrl.u32 920167782, %v948
      %v961 = vor.u32 %v959, %v960
      %v962 = vshll.u32 920167782, %v947
      %v963 = vshrl.u32 1326507024, %v948
      %v964 = vor.u32 %v962, %v963
      %vm965 = vcmp.lt.s32.totalorder %v946, 1
      %vm966 = vcmp.lt.s32.totalorder %v946, 2
      %vm967 = vcmp.lt.s32.totalorder %v946, 3
      %vm968 = vcmp.lt.s32.totalorder %v946, 4
      %v969 = vsel %vm965, %v949, %v952
      %v970 = vsel %vm968, %v958, 2102212464
      %v971 = vsel %vm967, %v955, %v970
      %v972 = vsel %vm966, %v969, %v971
      %v973 = vsel %vm965, %v952, %v955
      %v974 = vsel %vm968, %v961, 920167782
      %v975 = vsel %vm967, %v958, %v974
      %v976 = vsel %vm966, %v973, %v975
      %v977 = vsel %vm965, %v955, %v958
      %v978 = vsel %vm968, %v964, 1326507024
      %v979 = vsel %vm967, %v961, %v978
      %v980 = vsel %vm966, %v977, %v979
      %v981 = vshll.u32 %v941, 8
      %v982 = vand.u32 %v981, 65535
      %v983 = vshrl.u32 %v981, 16
      %v984 = vand.u32 %v980, 65535
      %v985 = vshrl.u32 %v980, 16
      %v986 = vmul.u32 %v982, %v984
      %v987 = vmul.u32 %v982, %v985
      %v988 = vmul.u32 %v983, %v984
      %v989 = vmul.u32 %v983, %v985
      %v990 = vshll.u32 %v987, 16
      %v991 = vshrl.u32 %v987, 16
      %v992 = vshll.u32 %v988, 16
      %v993 = vshrl.u32 %v988, 16
      %vm994 = vc.u32 %v986, %v990
      %v995 = vsel %vm994, 1, 0
      %v996 = vadd.s32 %v986, %v990
      %v997 = vadd.s32 %v989, %v995
      %vm998 = vc.u32 %v996, %v992
      %v999 = vsel %vm998, 1, 0
      %v1000 = vadd.s32 %v996, %v992
      %v1001 = vadd.s32 %v997, %v999
      %v1002 = vadd.s32 %v1001, %v991
      %v1003 = vadd.s32 %v1002, %v993
      %v1004 = vand.u32 %v981, 65535
      %v1005 = vshrl.u32 %v981, 16
      %v1006 = vand.u32 %v976, 65535
      %v1007 = vshrl.u32 %v976, 16
      %v1008 = vmul.u32 %v1004, %v1006
      %v1009 = vmul.u32 %v1004, %v1007
      %v1010 = vmul.u32 %v1005, %v1006
      %v1011 = vmul.u32 %v1005, %v1007
      %v1012 = vshll.u32 %v1009, 16
      %v1013 = vshrl.u32 %v1009, 16
      %v1014 = vshll.u32 %v1010, 16
      %v1015 = vshrl.u32 %v1010, 16
      %vm1016 = vc.u32 %v1008, %v1012
      %v1017 = vsel %vm1016, 1, 0
      %v1018 = vadd.s32 %v1008, %v1012
      %v1019 = vadd.s32 %v1011, %v1017
      %vm1020 = vc.u32 %v1018, %v1014
      %v1021 = vsel %vm1020, 1, 0
      %v1022 = vadd.s32 %v1018, %v1014
      %v1023 = vadd.s32 %v1019, %v1021
      %v1024 = vadd.s32 %v1023, %v1013
      %v1025 = vadd.s32 %v1024, %v1015
      %v1026 = vmul.u32 %v981, %v972
      %v1027 = vadd.s32 %v1003, %v1022
      %vm1028 = vc.u32 %v1003, %v1022
      %v1029 = vadd.s32 %v1025, 1
      %v1030 = vsel %vm1028, %v1029, %v1025
      %v1031 = vadd.s32 %v1026, %v1030
      %v1032 = vadd.s32 %v1031, 536870912
      %v1033 = vshrl.u32 %v1032, 30
      %v1034 = vshll.u32 %v1033, 30
      %v1035 = vsub.s32 %v1031, %v1034
      %vm1036 = vcmp.lt.s32.totalorder %v1035, 0
      %v1037 = vsub.s32 0, %v1035
      %v1038 = vsel %vm1036, %v1037, %v1035
      %v1039 = vclz %v1038
      %v1040 = vsub.s32 %v1039, 2
      %vm1041 = vcmp.gt.s32.totalorder 0, %v1040
      %v1042 = vsel %vm1041, 0, %v1040
      %v1043 = vsub.s32 32, %v1042
      %v1044 = vshll.u32 %v1035, %v1042
      %v1045 = vshrl.u32 %v1027, %v1043
      %v1046 = vor.u32 %v1044, %v1045
      %v1047 = vsub.s32 4294967266, %v1042
      %v1048 = vadd.s32 %v1047, 127
      %v1049 = vshll.u32 %v1048, 23
      %v1050 = vor.u32 4788187, %v1049
      %v1051 = vand.u32 2147483647, %v1050
      %v1053 = vcvt.s32.f32 %v1046
      %v1054 = vmul.f32 %v1053, %v1051
      %v1055 = vxor.u32 %v1054, 2147483648
      %v1056 = vsel %vm935, %v1055, %v1054
      %v1057 = vsub.s32 4, %v1033
      %v1058 = vsel %vm935, %v1057, %v1033
      %v1059 = vsel %vm934, %v278, %v1056
      %v1060 = vsel %vm934, 0, %v1058
      %v1061 = vmul.f32 %v1059, %v1059
      %v1062 = vmul.f32 %v1061, -0.001358992
      %v1063 = vadd.f32 %v1062, 0.041655596
      %v1064 = vmul.f32 %v1061, %v1063
      %v1065 = vadd.f32 %v1064, -0.4999988
      %v1066 = vmul.f32 %v1061, %v1065
      %v1067 = vadd.f32 1.0, %v1066
      %v1068 = vmul.f32 %v1059, %v1059
      %v1069 = vmul.f32 %v1068, -0.00019511016
      %v1070 = vadd.f32 %v1069, 0.008332121
      %v1071 = vmul.f32 %v1068, %v1070
      %v1072 = vadd.f32 %v1071, -0.16666654
      %v1073 = vmul.f32 %v1068, %v1072
      %v1074 = vadd.f32 %v1073, 1.0
      %v1075 = vmul.f32 %v1074, %v1059
      %vm1076 = vweird.f32 %v278
      %v1077 = vadd.s32 %v1060, 3
      %v1078 = vand.u32 %v1077, 3
      %vm1079 = vcmp.lt.s32.totalorder %v1078, 2
      %vm1080 = vcmp.eq.s32.totalorder %v1078, 0
      %v1081 = vxor.u32 %v1075, 2147483648
      %v1082 = vsel %vm1080, %v1067, %v1081
      %vm1083 = vcmp.eq.s32.totalorder %v1078, 2
      %v1084 = vxor.u32 %v1067, 2147483648
      %v1085 = vsel %vm1083, %v1084, %v1075
      %v1086 = vsel %vm1079, %v1082, %v1085
      %v1087 = vsel %vm1076, nan, %v1086
      %v1088 = vand.u32 2147483647, %v281
      %vm1089 = vcmp.le.f32.partialorder %v1088, 0.7853982
      %vm1090 = vcmp.lt.s32.totalorder %v281, 0
      %v1091 = vand.u32 %v281, 2139095040
      %v1092 = vshrl.u32 %v1091, 23
      %v1093 = vsub.s32 %v1092, 127
      %v1094 = vand.u32 2147483647, %v281
      %v1095 = vand.u32 %v1094, 8388607
      %v1096 = vor.u32 %v1095, 8388608
      %v1097 = vsub.s32 0, %v1096
      %v1098 = vadd.s32 %v1093, 1
      %vm1099 = vcmp.gt.s32.totalorder %v1098, 0
      %v1100 = vsel %vm1099, %v1098, 0
      %v1101 = vshrl.u32 %v1100, 5
      %v1102 = vand.u32 %v1100, 31
      %v1103 = vsub.s32 32, %v1102
      %v1104 = vshrl.u32 683565275, %v1103
      %v1105 = vshll.u32 683565275, %v1102
      %v1106 = vshrl.u32 2475754826, %v1103
      %v1107 = vor.u32 %v1105, %v1106
      %v1108 = vshll.u32 2475754826, %v1102
      %v1109 = vshrl.u32 2131351028, %v1103
      %v1110 = vor.u32 %v1108, %v1109
      %v1111 = vshll.u32 2131351028, %v1102
      %v1112 = vshrl.u32 2102212464, %v1103
      %v1113 = vor.u32 %v1111, %v1112
      %v1114 = vshll.u32 2102212464, %v1102
      %v1115 = vshrl.u32 920167782, %v1103
      %v1116 = vor.u32 %v1114, %v1115
      %v1117 = vshll.u32 920167782, %v1102
      %v1118 = vshrl.u32 1326507024, %v1103
      %v1119 = vor.u32 %v1117, %v1118
      %vm1120 = vcmp.lt.s32.totalorder %v1101, 1
      %vm1121 = vcmp.lt.s32.totalorder %v1101, 2
      %vm1122 = vcmp.lt.s32.totalorder %v1101, 3
      %vm1123 = vcmp.lt.s32.totalorder %v1101, 4
      %v1124 = vsel %vm1120, %v1104, %v1107
      %v1125 = vsel %vm1123, %v1113, 2102212464
      %v1126 = vsel %vm1122, %v1110, %v1125
      %v1127 = vsel %vm1121, %v1124, %v1126
      %v1128 = vsel %vm1120, %v1107, %v1110
      %v1129 = vsel %vm1123, %v1116, 920167782
      %v1130 = vsel %vm1122, %v1113, %v1129
      %v1131 = vsel %vm1121, %v1128, %v1130
      %v1132 = vsel %vm1120, %v1110, %v1113
      %v1133 = vsel %vm1123, %v1119, 1326507024
      %v1134 = vsel %vm1122, %v1116, %v1133
      %v1135 = vsel %vm1121, %v1132, %v1134
      %v1136 = vshll.u32 %v1096, 8
      %v1137 = vand.u32 %v1136, 65535
      %v1138 = vshrl.u32 %v1136, 16
      %v1139 = vand.u32 %v1135, 65535
      %v1140 = vshrl.u32 %v1135, 16
      %v1141 = vmul.u32 %v1137, %v1139
      %v1142 = vmul.u32 %v1137, %v1140
      %v1143 = vmul.u32 %v1138, %v1139
      %v1144 = vmul.u32 %v1138, %v1140
      %v1145 = vshll.u32 %v1142, 16
      %v1146 = vshrl.u32 %v1142, 16
      %v1147 = vshll.u32 %v1143, 16
      %v1148 = vshrl.u32 %v1143, 16
      %vm1149 = vc.u32 %v1141, %v1145
      %v1150 = vsel %vm1149, 1, 0
      %v1151 = vadd.s32 %v1141, %v1145
      %v1152 = vadd.s32 %v1144, %v1150
      %vm1153 = vc.u32 %v1151, %v1147
      %v1154 = vsel %vm1153, 1, 0
      %v1155 = vadd.s32 %v1151, %v1147
      %v1156 = vadd.s32 %v1152, %v1154
      %v1157 = vadd.s32 %v1156, %v1146
      %v1158 = vadd.s32 %v1157, %v1148
      %v1159 = vand.u32 %v1136, 65535
      %v1160 = vshrl.u32 %v1136, 16
      %v1161 = vand.u32 %v1131, 65535
      %v1162 = vshrl.u32 %v1131, 16
      %v1163 = vmul.u32 %v1159, %v1161
      %v1164 = vmul.u32 %v1159, %v1162
      %v1165 = vmul.u32 %v1160, %v1161
      %v1166 = vmul.u32 %v1160, %v1162
      %v1167 = vshll.u32 %v1164, 16
      %v1168 = vshrl.u32 %v1164, 16
      %v1169 = vshll.u32 %v1165, 16
      %v1170 = vshrl.u32 %v1165, 16
      %vm1171 = vc.u32 %v1163, %v1167
      %v1172 = vsel %vm1171, 1, 0
      %v1173 = vadd.s32 %v1163, %v1167
      %v1174 = vadd.s32 %v1166, %v1172
      %vm1175 = vc.u32 %v1173, %v1169
      %v1176 = vsel %vm1175, 1, 0
      %v1177 = vadd.s32 %v1173, %v1169
      %v1178 = vadd.s32 %v1174, %v1176
      %v1179 = vadd.s32 %v1178, %v1168
      %v1180 = vadd.s32 %v1179, %v1170
      %v1181 = vmul.u32 %v1136, %v1127
      %v1182 = vadd.s32 %v1158, %v1177
      %vm1183 = vc.u32 %v1158, %v1177
      %v1184 = vadd.s32 %v1180, 1
      %v1185 = vsel %vm1183, %v1184, %v1180
      %v1186 = vadd.s32 %v1181, %v1185
      %v1187 = vadd.s32 %v1186, 536870912
      %v1188 = vshrl.u32 %v1187, 30
      %v1189 = vshll.u32 %v1188, 30
      %v1190 = vsub.s32 %v1186, %v1189
      %vm1191 = vcmp.lt.s32.totalorder %v1190, 0
      %v1192 = vsub.s32 0, %v1190
      %v1193 = vsel %vm1191, %v1192, %v1190
      %v1194 = vclz %v1193
      %v1195 = vsub.s32 %v1194, 2
      %vm1196 = vcmp.gt.s32.totalorder 0, %v1195
      %v1197 = vsel %vm1196, 0, %v1195
      %v1198 = vsub.s32 32, %v1197
      %v1199 = vshll.u32 %v1190, %v1197
      %v1200 = vshrl.u32 %v1182, %v1198
      %v1201 = vor.u32 %v1199, %v1200
      %v1202 = vsub.s32 4294967266, %v1197
      %v1203 = vadd.s32 %v1202, 127
      %v1204 = vshll.u32 %v1203, 23
      %v1205 = vor.u32 4788187, %v1204
      %v1206 = vand.u32 2147483647, %v1205
      %v1208 = vcvt.s32.f32 %v1201
      %v1209 = vmul.f32 %v1208, %v1206
      %v1210 = vxor.u32 %v1209, 2147483648
      %v1211 = vsel %vm1090, %v1210, %v1209
      %v1212 = vsub.s32 4, %v1188
      %v1213 = vsel %vm1090, %v1212, %v1188
      %v1214 = vsel %vm1089, %v281, %v1211
      %v1215 = vsel %vm1089, 0, %v1213
      %v1216 = vmul.f32 %v1214, %v1214
      %v1217 = vmul.f32 %v1216, -0.001358992
      %v1218 = vadd.f32 %v1217, 0.041655596
      %v1219 = vmul.f32 %v1216, %v1218
      %v1220 = vadd.f32 %v1219, -0.4999988
      %v1221 = vmul.f32 %v1216, %v1220
      %v1222 = vadd.f32 1.0, %v1221
      %v1223 = vmul.f32 %v1214, %v1214
      %v1224 = vmul.f32 %v1223, -0.00019511016
      %v1225 = vadd.f32 %v1224, 0.008332121
      %v1226 = vmul.f32 %v1223, %v1225
      %v1227 = vadd.f32 %v1226, -0.16666654
      %v1228 = vmul.f32 %v1223, %v1227
      %v1229 = vadd.f32 %v1228, 1.0
      %v1230 = vmul.f32 %v1229, %v1214
      %vm1231 = vweird.f32 %v281
      %v1232 = vadd.s32 %v1215, 3
      %v1233 = vand.u32 %v1232, 3
      %vm1234 = vcmp.lt.s32.totalorder %v1233, 2
      %vm1235 = vcmp.eq.s32.totalorder %v1233, 0
      %v1236 = vxor.u32 %v1230, 2147483648
      %v1237 = vsel %vm1235, %v1222, %v1236
      %vm1238 = vcmp.eq.s32.totalorder %v1233, 2
      %v1239 = vxor.u32 %v1222, 2147483648
      %v1240 = vsel %vm1238, %v1239, %v1230
      %v1241 = vsel %vm1234, %v1237, %v1240
      %v1242 = vsel %vm1231, nan, %v1241
      %v1243 = vand.u32 2147483647, %v284
      %vm1244 = vcmp.le.f32.partialorder %v1243, 0.7853982
      %vm1245 = vcmp.lt.s32.totalorder %v284, 0
      %v1246 = vand.u32 %v284, 2139095040
      %v1247 = vshrl.u32 %v1246, 23
      %v1248 = vsub.s32 %v1247, 127
      %v1249 = vand.u32 2147483647, %v284
      %v1250 = vand.u32 %v1249, 8388607
      %v1251 = vor.u32 %v1250, 8388608
      %v1252 = vsub.s32 0, %v1251
      %v1253 = vadd.s32 %v1248, 1
      %vm1254 = vcmp.gt.s32.totalorder %v1253, 0
      %v1255 = vsel %vm1254, %v1253, 0
      %v1256 = vshrl.u32 %v1255, 5
      %v1257 = vand.u32 %v1255, 31
      %v1258 = vsub.s32 32, %v1257
      %v1259 = vshrl.u32 683565275, %v1258
      %v1260 = vshll.u32 683565275, %v1257
      %v1261 = vshrl.u32 2475754826, %v1258
      %v1262 = vor.u32 %v1260, %v1261
      %v1263 = vshll.u32 2475754826, %v1257
      %v1264 = vshrl.u32 2131351028, %v1258
      %v1265 = vor.u32 %v1263, %v1264
      %v1266 = vshll.u32 2131351028, %v1257
      %v1267 = vshrl.u32 2102212464, %v1258
      %v1268 = vor.u32 %v1266, %v1267
      %v1269 = vshll.u32 2102212464, %v1257
      %v1270 = vshrl.u32 920167782, %v1258
      %v1271 = vor.u32 %v1269, %v1270
      %v1272 = vshll.u32 920167782, %v1257
      %v1273 = vshrl.u32 1326507024, %v1258
      %v1274 = vor.u32 %v1272, %v1273
      %vm1275 = vcmp.lt.s32.totalorder %v1256, 1
      %vm1276 = vcmp.lt.s32.totalorder %v1256, 2
      %vm1277 = vcmp.lt.s32.totalorder %v1256, 3
      %vm1278 = vcmp.lt.s32.totalorder %v1256, 4
      %v1279 = vsel %vm1275, %v1259, %v1262
      %v1280 = vsel %vm1278, %v1268, 2102212464
      %v1281 = vsel %vm1277, %v1265, %v1280
      %v1282 = vsel %vm1276, %v1279, %v1281
      %v1283 = vsel %vm1275, %v1262, %v1265
      %v1284 = vsel %vm1278, %v1271, 920167782
      %v1285 = vsel %vm1277, %v1268, %v1284
      %v1286 = vsel %vm1276, %v1283, %v1285
      %v1287 = vsel %vm1275, %v1265, %v1268
      %v1288 = vsel %vm1278, %v1274, 1326507024
      %v1289 = vsel %vm1277, %v1271, %v1288
      %v1290 = vsel %vm1276, %v1287, %v1289
      %v1291 = vshll.u32 %v1251, 8
      %v1292 = vand.u32 %v1291, 65535
      %v1293 = vshrl.u32 %v1291, 16
      %v1294 = vand.u32 %v1290, 65535
      %v1295 = vshrl.u32 %v1290, 16
      %v1296 = vmul.u32 %v1292, %v1294
      %v1297 = vmul.u32 %v1292, %v1295
      %v1298 = vmul.u32 %v1293, %v1294
      %v1299 = vmul.u32 %v1293, %v1295
      %v1300 = vshll.u32 %v1297, 16
      %v1301 = vshrl.u32 %v1297, 16
      %v1302 = vshll.u32 %v1298, 16
      %v1303 = vshrl.u32 %v1298, 16
      %vm1304 = vc.u32 %v1296, %v1300
      %v1305 = vsel %vm1304, 1, 0
      %v1306 = vadd.s32 %v1296, %v1300
      %v1307 = vadd.s32 %v1299, %v1305
      %vm1308 = vc.u32 %v1306, %v1302
      %v1309 = vsel %vm1308, 1, 0
      %v1310 = vadd.s32 %v1306, %v1302
      %v1311 = vadd.s32 %v1307, %v1309
      %v1312 = vadd.s32 %v1311, %v1301
      %v1313 = vadd.s32 %v1312, %v1303
      %v1314 = vand.u32 %v1291, 65535
      %v1315 = vshrl.u32 %v1291, 16
      %v1316 = vand.u32 %v1286, 65535
      %v1317 = vshrl.u32 %v1286, 16
      %v1318 = vmul.u32 %v1314, %v1316
      %v1319 = vmul.u32 %v1314, %v1317
      %v1320 = vmul.u32 %v1315, %v1316
      %v1321 = vmul.u32 %v1315, %v1317
      %v1322 = vshll.u32 %v1319, 16
      %v1323 = vshrl.u32 %v1319, 16
      %v1324 = vshll.u32 %v1320, 16
      %v1325 = vshrl.u32 %v1320, 16
      %vm1326 = vc.u32 %v1318, %v1322
      %v1327 = vsel %vm1326, 1, 0
      %v1328 = vadd.s32 %v1318, %v1322
      %v1329 = vadd.s32 %v1321, %v1327
      %vm1330 = vc.u32 %v1328, %v1324
      %v1331 = vsel %vm1330, 1, 0
      %v1332 = vadd.s32 %v1328, %v1324
      %v1333 = vadd.s32 %v1329, %v1331
      %v1334 = vadd.s32 %v1333, %v1323
      %v1335 = vadd.s32 %v1334, %v1325
      %v1336 = vmul.u32 %v1291, %v1282
      %v1337 = vadd.s32 %v1313, %v1332
      %vm1338 = vc.u32 %v1313, %v1332
      %v1339 = vadd.s32 %v1335, 1
      %v1340 = vsel %vm1338, %v1339, %v1335
      %v1341 = vadd.s32 %v1336, %v1340
      %v1342 = vadd.s32 %v1341, 536870912
      %v1343 = vshrl.u32 %v1342, 30
      %v1344 = vshll.u32 %v1343, 30
      %v1345 = vsub.s32 %v1341, %v1344
      %vm1346 = vcmp.lt.s32.totalorder %v1345, 0
      %v1347 = vsub.s32 0, %v1345
      %v1348 = vsel %vm1346, %v1347, %v1345
      %v1349 = vclz %v1348
      %v1350 = vsub.s32 %v1349, 2
      %vm1351 = vcmp.gt.s32.totalorder 0, %v1350
      %v1352 = vsel %vm1351, 0, %v1350
      %v1353 = vsub.s32 32, %v1352
      %v1354 = vshll.u32 %v1345, %v1352
      %v1355 = vshrl.u32 %v1337, %v1353
      %v1356 = vor.u32 %v1354, %v1355
      %v1357 = vsub.s32 4294967266, %v1352
      %v1358 = vadd.s32 %v1357, 127
      %v1359 = vshll.u32 %v1358, 23
      %v1360 = vor.u32 4788187, %v1359
      %v1361 = vand.u32 2147483647, %v1360
      %v1363 = vcvt.s32.f32 %v1356
      %v1364 = vmul.f32 %v1363, %v1361
      %v1365 = vxor.u32 %v1364, 2147483648
      %v1366 = vsel %vm1245, %v1365, %v1364
      %v1367 = vsub.s32 4, %v1343
      %v1368 = vsel %vm1245, %v1367, %v1343
      %v1369 = vsel %vm1244, %v284, %v1366
      %v1370 = vsel %vm1244, 0, %v1368
      %v1371 = vmul.f32 %v1369, %v1369
      %v1372 = vmul.f32 %v1371, -0.001358992
      %v1373 = vadd.f32 %v1372, 0.041655596
      %v1374 = vmul.f32 %v1371, %v1373
      %v1375 = vadd.f32 %v1374, -0.4999988
      %v1376 = vmul.f32 %v1371, %v1375
      %v1377 = vadd.f32 1.0, %v1376
      %v1378 = vmul.f32 %v1369, %v1369
      %v1379 = vmul.f32 %v1378, -0.00019511016
      %v1380 = vadd.f32 %v1379, 0.008332121
      %v1381 = vmul.f32 %v1378, %v1380
      %v1382 = vadd.f32 %v1381, -0.16666654
      %v1383 = vmul.f32 %v1378, %v1382
      %v1384 = vadd.f32 %v1383, 1.0
      %v1385 = vmul.f32 %v1384, %v1369
      %vm1386 = vweird.f32 %v284
      %v1387 = vadd.s32 %v1370, 3
      %v1388 = vand.u32 %v1387, 3
      %vm1389 = vcmp.lt.s32.totalorder %v1388, 2
      %vm1390 = vcmp.eq.s32.totalorder %v1388, 0
      %v1391 = vxor.u32 %v1385, 2147483648
      %v1392 = vsel %vm1390, %v1377, %v1391
      %vm1393 = vcmp.eq.s32.totalorder %v1388, 2
      %v1394 = vxor.u32 %v1377, 2147483648
      %v1395 = vsel %vm1393, %v1394, %v1385
      %v1396 = vsel %vm1389, %v1392, %v1395
      %v1397 = vsel %vm1386, nan, %v1396
      %v1398 = vand.u32 2147483647, %v287
      %vm1399 = vcmp.le.f32.partialorder %v1398, 0.7853982
      %vm1400 = vcmp.lt.s32.totalorder %v287, 0
      %v1401 = vand.u32 %v287, 2139095040
      %v1402 = vshrl.u32 %v1401, 23
      %v1403 = vsub.s32 %v1402, 127
      %v1404 = vand.u32 2147483647, %v287
      %v1405 = vand.u32 %v1404, 8388607
      %v1406 = vor.u32 %v1405, 8388608
      %v1407 = vsub.s32 0, %v1406
      %v1408 = vadd.s32 %v1403, 1
      %vm1409 = vcmp.gt.s32.totalorder %v1408, 0
      %v1410 = vsel %vm1409, %v1408, 0
      %v1411 = vshrl.u32 %v1410, 5
      %v1412 = vand.u32 %v1410, 31
      %v1413 = vsub.s32 32, %v1412
      %v1414 = vshrl.u32 683565275, %v1413
      %v1415 = vshll.u32 683565275, %v1412
      %v1416 = vshrl.u32 2475754826, %v1413
      %v1417 = vor.u32 %v1415, %v1416
      %v1418 = vshll.u32 2475754826, %v1412
      %v1419 = vshrl.u32 2131351028, %v1413
      %v1420 = vor.u32 %v1418, %v1419
      %v1421 = vshll.u32 2131351028, %v1412
      %v1422 = vshrl.u32 2102212464, %v1413
      %v1423 = vor.u32 %v1421, %v1422
      %v1424 = vshll.u32 2102212464, %v1412
      %v1425 = vshrl.u32 920167782, %v1413
      %v1426 = vor.u32 %v1424, %v1425
      %v1427 = vshll.u32 920167782, %v1412
      %v1428 = vshrl.u32 1326507024, %v1413
      %v1429 = vor.u32 %v1427, %v1428
      %vm1430 = vcmp.lt.s32.totalorder %v1411, 1
      %vm1431 = vcmp.lt.s32.totalorder %v1411, 2
      %vm1432 = vcmp.lt.s32.totalorder %v1411, 3
      %vm1433 = vcmp.lt.s32.totalorder %v1411, 4
      %v1434 = vsel %vm1430, %v1414, %v1417
      %v1435 = vsel %vm1433, %v1423, 2102212464
      %v1436 = vsel %vm1432, %v1420, %v1435
      %v1437 = vsel %vm1431, %v1434, %v1436
      %v1438 = vsel %vm1430, %v1417, %v1420
      %v1439 = vsel %vm1433, %v1426, 920167782
      %v1440 = vsel %vm1432, %v1423, %v1439
      %v1441 = vsel %vm1431, %v1438, %v1440
      %v1442 = vsel %vm1430, %v1420, %v1423
      %v1443 = vsel %vm1433, %v1429, 1326507024
      %v1444 = vsel %vm1432, %v1426, %v1443
      %v1445 = vsel %vm1431, %v1442, %v1444
      %v1446 = vshll.u32 %v1406, 8
      %v1447 = vand.u32 %v1446, 65535
      %v1448 = vshrl.u32 %v1446, 16
      %v1449 = vand.u32 %v1445, 65535
      %v1450 = vshrl.u32 %v1445, 16
      %v1451 = vmul.u32 %v1447, %v1449
      %v1452 = vmul.u32 %v1447, %v1450
      %v1453 = vmul.u32 %v1448, %v1449
      %v1454 = vmul.u32 %v1448, %v1450
      %v1455 = vshll.u32 %v1452, 16
      %v1456 = vshrl.u32 %v1452, 16
      %v1457 = vshll.u32 %v1453, 16
      %v1458 = vshrl.u32 %v1453, 16
      %vm1459 = vc.u32 %v1451, %v1455
      %v1460 = vsel %vm1459, 1, 0
      %v1461 = vadd.s32 %v1451, %v1455
      %v1462 = vadd.s32 %v1454, %v1460
      %vm1463 = vc.u32 %v1461, %v1457
      %v1464 = vsel %vm1463, 1, 0
      %v1465 = vadd.s32 %v1461, %v1457
      %v1466 = vadd.s32 %v1462, %v1464
      %v1467 = vadd.s32 %v1466, %v1456
      %v1468 = vadd.s32 %v1467, %v1458
      %v1469 = vand.u32 %v1446, 65535
      %v1470 = vshrl.u32 %v1446, 16
      %v1471 = vand.u32 %v1441, 65535
      %v1472 = vshrl.u32 %v1441, 16
      %v1473 = vmul.u32 %v1469, %v1471
      %v1474 = vmul.u32 %v1469, %v1472
      %v1475 = vmul.u32 %v1470, %v1471
      %v1476 = vmul.u32 %v1470, %v1472
      %v1477 = vshll.u32 %v1474, 16
      %v1478 = vshrl.u32 %v1474, 16
      %v1479 = vshll.u32 %v1475, 16
      %v1480 = vshrl.u32 %v1475, 16
      %vm1481 = vc.u32 %v1473, %v1477
      %v1482 = vsel %vm1481, 1, 0
      %v1483 = vadd.s32 %v1473, %v1477
      %v1484 = vadd.s32 %v1476, %v1482
      %vm1485 = vc.u32 %v1483, %v1479
      %v1486 = vsel %vm1485, 1, 0
      %v1487 = vadd.s32 %v1483, %v1479
      %v1488 = vadd.s32 %v1484, %v1486
      %v1489 = vadd.s32 %v1488, %v1478
      %v1490 = vadd.s32 %v1489, %v1480
      %v1491 = vmul.u32 %v1446, %v1437
      %v1492 = vadd.s32 %v1468, %v1487
      %vm1493 = vc.u32 %v1468, %v1487
      %v1494 = vadd.s32 %v1490, 1
      %v1495 = vsel %vm1493, %v1494, %v1490
      %v1496 = vadd.s32 %v1491, %v1495
      %v1497 = vadd.s32 %v1496, 536870912
      %v1498 = vshrl.u32 %v1497, 30
      %v1499 = vshll.u32 %v1498, 30
      %v1500 = vsub.s32 %v1496, %v1499
      %vm1501 = vcmp.lt.s32.totalorder %v1500, 0
      %v1502 = vsub.s32 0, %v1500
      %v1503 = vsel %vm1501, %v1502, %v1500
      %v1504 = vclz %v1503
      %v1505 = vsub.s32 %v1504, 2
      %vm1506 = vcmp.gt.s32.totalorder 0, %v1505
      %v1507 = vsel %vm1506, 0, %v1505
      %v1508 = vsub.s32 32, %v1507
      %v1509 = vshll.u32 %v1500, %v1507
      %v1510 = vshrl.u32 %v1492, %v1508
      %v1511 = vor.u32 %v1509, %v1510
      %v1512 = vsub.s32 4294967266, %v1507
      %v1513 = vadd.s32 %v1512, 127
      %v1514 = vshll.u32 %v1513, 23
      %v1515 = vor.u32 4788187, %v1514
      %v1516 = vand.u32 2147483647, %v1515
      %v1518 = vcvt.s32.f32 %v1511
      %v1519 = vmul.f32 %v1518, %v1516
      %v1520 = vxor.u32 %v1519, 2147483648
      %v1521 = vsel %vm1400, %v1520, %v1519
      %v1522 = vsub.s32 4, %v1498
      %v1523 = vsel %vm1400, %v1522, %v1498
      %v1524 = vsel %vm1399, %v287, %v1521
      %v1525 = vsel %vm1399, 0, %v1523
      %v1526 = vmul.f32 %v1524, %v1524
      %v1527 = vmul.f32 %v1526, -0.001358992
      %v1528 = vadd.f32 %v1527, 0.041655596
      %v1529 = vmul.f32 %v1526, %v1528
      %v1530 = vadd.f32 %v1529, -0.4999988
      %v1531 = vmul.f32 %v1526, %v1530
      %v1532 = vadd.f32 1.0, %v1531
      %v1533 = vmul.f32 %v1524, %v1524
      %v1534 = vmul.f32 %v1533, -0.00019511016
      %v1535 = vadd.f32 %v1534, 0.008332121
      %v1536 = vmul.f32 %v1533, %v1535
      %v1537 = vadd.f32 %v1536, -0.16666654
      %v1538 = vmul.f32 %v1533, %v1537
      %v1539 = vadd.f32 %v1538, 1.0
      %v1540 = vmul.f32 %v1539, %v1524
      %vm1541 = vweird.f32 %v287
      %v1542 = vadd.s32 %v1525, 3
      %v1543 = vand.u32 %v1542, 3
      %vm1544 = vcmp.lt.s32.totalorder %v1543, 2
      %vm1545 = vcmp.eq.s32.totalorder %v1543, 0
      %v1546 = vxor.u32 %v1540, 2147483648
      %v1547 = vsel %vm1545, %v1532, %v1546
      %vm1548 = vcmp.eq.s32.totalorder %v1543, 2
      %v1549 = vxor.u32 %v1532, 2147483648
      %v1550 = vsel %vm1548, %v1549, %v1540
      %v1551 = vsel %vm1544, %v1547, %v1550
      %v1552 = vsel %vm1541, nan, %v1551
      %v1553 = vand.u32 2147483647, %v290
      %vm1554 = vcmp.le.f32.partialorder %v1553, 0.7853982
      %vm1555 = vcmp.lt.s32.totalorder %v290, 0
      %v1556 = vand.u32 %v290, 2139095040
      %v1557 = vshrl.u32 %v1556, 23
      %v1558 = vsub.s32 %v1557, 127
      %v1559 = vand.u32 2147483647, %v290
      %v1560 = vand.u32 %v1559, 8388607
      %v1561 = vor.u32 %v1560, 8388608
      %v1562 = vsub.s32 0, %v1561
      %v1563 = vadd.s32 %v1558, 1
      %vm1564 = vcmp.gt.s32.totalorder %v1563, 0
      %v1565 = vsel %vm1564, %v1563, 0
      %v1566 = vshrl.u32 %v1565, 5
      %v1567 = vand.u32 %v1565, 31
      %v1568 = vsub.s32 32, %v1567
      %v1569 = vshrl.u32 683565275, %v1568
      %v1570 = vshll.u32 683565275, %v1567
      %v1571 = vshrl.u32 2475754826, %v1568
      %v1572 = vor.u32 %v1570, %v1571
      %v1573 = vshll.u32 2475754826, %v1567
      %v1574 = vshrl.u32 2131351028, %v1568
      %v1575 = vor.u32 %v1573, %v1574
      %v1576 = vshll.u32 2131351028, %v1567
      %v1577 = vshrl.u32 2102212464, %v1568
      %v1578 = vor.u32 %v1576, %v1577
      %v1579 = vshll.u32 2102212464, %v1567
      %v1580 = vshrl.u32 920167782, %v1568
      %v1581 = vor.u32 %v1579, %v1580
      %v1582 = vshll.u32 920167782, %v1567
      %v1583 = vshrl.u32 1326507024, %v1568
      %v1584 = vor.u32 %v1582, %v1583
      %vm1585 = vcmp.lt.s32.totalorder %v1566, 1
      %vm1586 = vcmp.lt.s32.totalorder %v1566, 2
      %vm1587 = vcmp.lt.s32.totalorder %v1566, 3
      %vm1588 = vcmp.lt.s32.totalorder %v1566, 4
      %v1589 = vsel %vm1585, %v1569, %v1572
      %v1590 = vsel %vm1588, %v1578, 2102212464
      %v1591 = vsel %vm1587, %v1575, %v1590
      %v1592 = vsel %vm1586, %v1589, %v1591
      %v1593 = vsel %vm1585, %v1572, %v1575
      %v1594 = vsel %vm1588, %v1581, 920167782
      %v1595 = vsel %vm1587, %v1578, %v1594
      %v1596 = vsel %vm1586, %v1593, %v1595
      %v1597 = vsel %vm1585, %v1575, %v1578
      %v1598 = vsel %vm1588, %v1584, 1326507024
      %v1599 = vsel %vm1587, %v1581, %v1598
      %v1600 = vsel %vm1586, %v1597, %v1599
      %v1601 = vshll.u32 %v1561, 8
      %v1602 = vand.u32 %v1601, 65535
      %v1603 = vshrl.u32 %v1601, 16
      %v1604 = vand.u32 %v1600, 65535
      %v1605 = vshrl.u32 %v1600, 16
      %v1606 = vmul.u32 %v1602, %v1604
      %v1607 = vmul.u32 %v1602, %v1605
      %v1608 = vmul.u32 %v1603, %v1604
      %v1609 = vmul.u32 %v1603, %v1605
      %v1610 = vshll.u32 %v1607, 16
      %v1611 = vshrl.u32 %v1607, 16
      %v1612 = vshll.u32 %v1608, 16
      %v1613 = vshrl.u32 %v1608, 16
      %vm1614 = vc.u32 %v1606, %v1610
      %v1615 = vsel %vm1614, 1, 0
      %v1616 = vadd.s32 %v1606, %v1610
      %v1617 = vadd.s32 %v1609, %v1615
      %vm1618 = vc.u32 %v1616, %v1612
      %v1619 = vsel %vm1618, 1, 0
      %v1620 = vadd.s32 %v1616, %v1612
      %v1621 = vadd.s32 %v1617, %v1619
      %v1622 = vadd.s32 %v1621, %v1611
      %v1623 = vadd.s32 %v1622, %v1613
      %v1624 = vand.u32 %v1601, 65535
      %v1625 = vshrl.u32 %v1601, 16
      %v1626 = vand.u32 %v1596, 65535
      %v1627 = vshrl.u32 %v1596, 16
      %v1628 = vmul.u32 %v1624, %v1626
      %v1629 = vmul.u32 %v1624, %v1627
      %v1630 = vmul.u32 %v1625, %v1626
      %v1631 = vmul.u32 %v1625, %v1627
      %v1632 = vshll.u32 %v1629, 16
      %v1633 = vshrl.u32 %v1629, 16
      %v1634 = vshll.u32 %v1630, 16
      %v1635 = vshrl.u32 %v1630, 16
      %vm1636 = vc.u32 %v1628, %v1632
      %v1637 = vsel %vm1636, 1, 0
      %v1638 = vadd.s32 %v1628, %v1632
      %v1639 = vadd.s32 %v1631, %v1637
      %vm1640 = vc.u32 %v1638, %v1634
      %v1641 = vsel %vm1640, 1, 0
      %v1642 = vadd.s32 %v1638, %v1634
      %v1643 = vadd.s32 %v1639, %v1641
      %v1644 = vadd.s32 %v1643, %v1633
      %v1645 = vadd.s32 %v1644, %v1635
      %v1646 = vmul.u32 %v1601, %v1592
      %v1647 = vadd.s32 %v1623, %v1642
      %vm1648 = vc.u32 %v1623, %v1642
      %v1649 = vadd.s32 %v1645, 1
      %v1650 = vsel %vm1648, %v1649, %v1645
      %v1651 = vadd.s32 %v1646, %v1650
      %v1652 = vadd.s32 %v1651, 536870912
      %v1653 = vshrl.u32 %v1652, 30
      %v1654 = vshll.u32 %v1653, 30
      %v1655 = vsub.s32 %v1651, %v1654
      %vm1656 = vcmp.lt.s32.totalorder %v1655, 0
      %v1657 = vsub.s32 0, %v1655
      %v1658 = vsel %vm1656, %v1657, %v1655
      %v1659 = vclz %v1658
      %v1660 = vsub.s32 %v1659, 2
      %vm1661 = vcmp.gt.s32.totalorder 0, %v1660
      %v1662 = vsel %vm1661, 0, %v1660
      %v1663 = vsub.s32 32, %v1662
      %v1664 = vshll.u32 %v1655, %v1662
      %v1665 = vshrl.u32 %v1647, %v1663
      %v1666 = vor.u32 %v1664, %v1665
      %v1667 = vsub.s32 4294967266, %v1662
      %v1668 = vadd.s32 %v1667, 127
      %v1669 = vshll.u32 %v1668, 23
      %v1670 = vor.u32 4788187, %v1669
      %v1671 = vand.u32 2147483647, %v1670
      %v1673 = vcvt.s32.f32 %v1666
      %v1674 = vmul.f32 %v1673, %v1671
      %v1675 = vxor.u32 %v1674, 2147483648
      %v1676 = vsel %vm1555, %v1675, %v1674
      %v1677 = vsub.s32 4, %v1653
      %v1678 = vsel %vm1555, %v1677, %v1653
      %v1679 = vsel %vm1554, %v290, %v1676
      %v1680 = vsel %vm1554, 0, %v1678
      %v1681 = vmul.f32 %v1679, %v1679
      %v1682 = vmul.f32 %v1681, -0.001358992
      %v1683 = vadd.f32 %v1682, 0.041655596
      %v1684 = vmul.f32 %v1681, %v1683
      %v1685 = vadd.f32 %v1684, -0.4999988
      %v1686 = vmul.f32 %v1681, %v1685
      %v1687 = vadd.f32 1.0, %v1686
      %v1688 = vmul.f32 %v1679, %v1679
      %v1689 = vmul.f32 %v1688, -0.00019511016
      %v1690 = vadd.f32 %v1689, 0.008332121
      %v1691 = vmul.f32 %v1688, %v1690
      %v1692 = vadd.f32 %v1691, -0.16666654
      %v1693 = vmul.f32 %v1688, %v1692
      %v1694 = vadd.f32 %v1693, 1.0
      %v1695 = vmul.f32 %v1694, %v1679
      %vm1696 = vweird.f32 %v290
      %v1697 = vadd.s32 %v1680, 3
      %v1698 = vand.u32 %v1697, 3
      %vm1699 = vcmp.lt.s32.totalorder %v1698, 2
      %vm1700 = vcmp.eq.s32.totalorder %v1698, 0
      %v1701 = vxor.u32 %v1695, 2147483648
      %v1702 = vsel %vm1700, %v1687, %v1701
      %vm1703 = vcmp.eq.s32.totalorder %v1698, 2
      %v1704 = vxor.u32 %v1687, 2147483648
      %v1705 = vsel %vm1703, %v1704, %v1695
      %v1706 = vsel %vm1699, %v1702, %v1705
      %v1707 = vsel %vm1696, nan, %v1706
      %v1708 = vand.u32 2147483647, %v293
      %vm1709 = vcmp.le.f32.partialorder %v1708, 0.7853982
      %vm1710 = vcmp.lt.s32.totalorder %v293, 0
      %v1711 = vand.u32 %v293, 2139095040
      %v1712 = vshrl.u32 %v1711, 23
      %v1713 = vsub.s32 %v1712, 127
      %v1714 = vand.u32 2147483647, %v293
      %v1715 = vand.u32 %v1714, 8388607
      %v1716 = vor.u32 %v1715, 8388608
      %v1717 = vsub.s32 0, %v1716
      %v1718 = vadd.s32 %v1713, 1
      %vm1719 = vcmp.gt.s32.totalorder %v1718, 0
      %v1720 = vsel %vm1719, %v1718, 0
      %v1721 = vshrl.u32 %v1720, 5
      %v1722 = vand.u32 %v1720, 31
      %v1723 = vsub.s32 32, %v1722
      %v1724 = vshrl.u32 683565275, %v1723
      %v1725 = vshll.u32 683565275, %v1722
      %v1726 = vshrl.u32 2475754826, %v1723
      %v1727 = vor.u32 %v1725, %v1726
      %v1728 = vshll.u32 2475754826, %v1722
      %v1729 = vshrl.u32 2131351028, %v1723
      %v1730 = vor.u32 %v1728, %v1729
      %v1731 = vshll.u32 2131351028, %v1722
      %v1732 = vshrl.u32 2102212464, %v1723
      %v1733 = vor.u32 %v1731, %v1732
      %v1734 = vshll.u32 2102212464, %v1722
      %v1735 = vshrl.u32 920167782, %v1723
      %v1736 = vor.u32 %v1734, %v1735
      %v1737 = vshll.u32 920167782, %v1722
      %v1738 = vshrl.u32 1326507024, %v1723
      %v1739 = vor.u32 %v1737, %v1738
      %vm1740 = vcmp.lt.s32.totalorder %v1721, 1
      %vm1741 = vcmp.lt.s32.totalorder %v1721, 2
      %vm1742 = vcmp.lt.s32.totalorder %v1721, 3
      %vm1743 = vcmp.lt.s32.totalorder %v1721, 4
      %v1744 = vsel %vm1740, %v1724, %v1727
      %v1745 = vsel %vm1743, %v1733, 2102212464
      %v1746 = vsel %vm1742, %v1730, %v1745
      %v1747 = vsel %vm1741, %v1744, %v1746
      %v1748 = vsel %vm1740, %v1727, %v1730
      %v1749 = vsel %vm1743, %v1736, 920167782
      %v1750 = vsel %vm1742, %v1733, %v1749
      %v1751 = vsel %vm1741, %v1748, %v1750
      %v1752 = vsel %vm1740, %v1730, %v1733
      %v1753 = vsel %vm1743, %v1739, 1326507024
      %v1754 = vsel %vm1742, %v1736, %v1753
      %v1755 = vsel %vm1741, %v1752, %v1754
      %v1756 = vshll.u32 %v1716, 8
      %v1757 = vand.u32 %v1756, 65535
      %v1758 = vshrl.u32 %v1756, 16
      %v1759 = vand.u32 %v1755, 65535
      %v1760 = vshrl.u32 %v1755, 16
      %v1761 = vmul.u32 %v1757, %v1759
      %v1762 = vmul.u32 %v1757, %v1760
      %v1763 = vmul.u32 %v1758, %v1759
      %v1764 = vmul.u32 %v1758, %v1760
      %v1765 = vshll.u32 %v1762, 16
      %v1766 = vshrl.u32 %v1762, 16
      %v1767 = vshll.u32 %v1763, 16
      %v1768 = vshrl.u32 %v1763, 16
      %vm1769 = vc.u32 %v1761, %v1765
      %v1770 = vsel %vm1769, 1, 0
      %v1771 = vadd.s32 %v1761, %v1765
      %v1772 = vadd.s32 %v1764, %v1770
      %vm1773 = vc.u32 %v1771, %v1767
      %v1774 = vsel %vm1773, 1, 0
      %v1775 = vadd.s32 %v1771, %v1767
      %v1776 = vadd.s32 %v1772, %v1774
      %v1777 = vadd.s32 %v1776, %v1766
      %v1778 = vadd.s32 %v1777, %v1768
      %v1779 = vand.u32 %v1756, 65535
      %v1780 = vshrl.u32 %v1756, 16
      %v1781 = vand.u32 %v1751, 65535
      %v1782 = vshrl.u32 %v1751, 16
      %v1783 = vmul.u32 %v1779, %v1781
      %v1784 = vmul.u32 %v1779, %v1782
      %v1785 = vmul.u32 %v1780, %v1781
      %v1786 = vmul.u32 %v1780, %v1782
      %v1787 = vshll.u32 %v1784, 16
      %v1788 = vshrl.u32 %v1784, 16
      %v1789 = vshll.u32 %v1785, 16
      %v1790 = vshrl.u32 %v1785, 16
      %vm1791 = vc.u32 %v1783, %v1787
      %v1792 = vsel %vm1791, 1, 0
      %v1793 = vadd.s32 %v1783, %v1787
      %v1794 = vadd.s32 %v1786, %v1792
      %vm1795 = vc.u32 %v1793, %v1789
      %v1796 = vsel %vm1795, 1, 0
      %v1797 = vadd.s32 %v1793, %v1789
      %v1798 = vadd.s32 %v1794, %v1796
      %v1799 = vadd.s32 %v1798, %v1788
      %v1800 = vadd.s32 %v1799, %v1790
      %v1801 = vmul.u32 %v1756, %v1747
      %v1802 = vadd.s32 %v1778, %v1797
      %vm1803 = vc.u32 %v1778, %v1797
      %v1804 = vadd.s32 %v1800, 1
      %v1805 = vsel %vm1803, %v1804, %v1800
      %v1806 = vadd.s32 %v1801, %v1805
      %v1807 = vadd.s32 %v1806, 536870912
      %v1808 = vshrl.u32 %v1807, 30
      %v1809 = vshll.u32 %v1808, 30
      %v1810 = vsub.s32 %v1806, %v1809
      %vm1811 = vcmp.lt.s32.totalorder %v1810, 0
      %v1812 = vsub.s32 0, %v1810
      %v1813 = vsel %vm1811, %v1812, %v1810
      %v1814 = vclz %v1813
      %v1815 = vsub.s32 %v1814, 2
      %vm1816 = vcmp.gt.s32.totalorder 0, %v1815
      %v1817 = vsel %vm1816, 0, %v1815
      %v1818 = vsub.s32 32, %v1817
      %v1819 = vshll.u32 %v1810, %v1817
      %v1820 = vshrl.u32 %v1802, %v1818
      %v1821 = vor.u32 %v1819, %v1820
      %v1822 = vsub.s32 4294967266, %v1817
      %v1823 = vadd.s32 %v1822, 127
      %v1824 = vshll.u32 %v1823, 23
      %v1825 = vor.u32 4788187, %v1824
      %v1826 = vand.u32 2147483647, %v1825
      %v1828 = vcvt.s32.f32 %v1821
      %v1829 = vmul.f32 %v1828, %v1826
      %v1830 = vxor.u32 %v1829, 2147483648
      %v1831 = vsel %vm1710, %v1830, %v1829
      %v1832 = vsub.s32 4, %v1808
      %v1833 = vsel %vm1710, %v1832, %v1808
      %v1834 = vsel %vm1709, %v293, %v1831
      %v1835 = vsel %vm1709, 0, %v1833
      %v1836 = vmul.f32 %v1834, %v1834
      %v1837 = vmul.f32 %v1836, -0.001358992
      %v1838 = vadd.f32 %v1837, 0.041655596
      %v1839 = vmul.f32 %v1836, %v1838
      %v1840 = vadd.f32 %v1839, -0.4999988
      %v1841 = vmul.f32 %v1836, %v1840
      %v1842 = vadd.f32 1.0, %v1841
      %v1843 = vmul.f32 %v1834, %v1834
      %v1844 = vmul.f32 %v1843, -0.00019511016
      %v1845 = vadd.f32 %v1844, 0.008332121
      %v1846 = vmul.f32 %v1843, %v1845
      %v1847 = vadd.f32 %v1846, -0.16666654
      %v1848 = vmul.f32 %v1843, %v1847
      %v1849 = vadd.f32 %v1848, 1.0
      %v1850 = vmul.f32 %v1849, %v1834
      %vm1851 = vweird.f32 %v293
      %v1852 = vadd.s32 %v1835, 3
      %v1853 = vand.u32 %v1852, 3
      %vm1854 = vcmp.lt.s32.totalorder %v1853, 2
      %vm1855 = vcmp.eq.s32.totalorder %v1853, 0
      %v1856 = vxor.u32 %v1850, 2147483648
      %v1857 = vsel %vm1855, %v1842, %v1856
      %vm1858 = vcmp.eq.s32.totalorder %v1853, 2
      %v1859 = vxor.u32 %v1842, 2147483648
      %v1860 = vsel %vm1858, %v1859, %v1850
      %v1861 = vsel %vm1854, %v1857, %v1860
      %v1862 = vsel %vm1851, nan, %v1861
      %v1863 = vand.u32 2147483647, %v296
      %vm1864 = vcmp.le.f32.partialorder %v1863, 0.7853982
      %vm1865 = vcmp.lt.s32.totalorder %v296, 0
      %v1866 = vand.u32 %v296, 2139095040
      %v1867 = vshrl.u32 %v1866, 23
      %v1868 = vsub.s32 %v1867, 127
      %v1869 = vand.u32 2147483647, %v296
      %v1870 = vand.u32 %v1869, 8388607
      %v1871 = vor.u32 %v1870, 8388608
      %v1872 = vsub.s32 0, %v1871
      %v1873 = vadd.s32 %v1868, 1
      %vm1874 = vcmp.gt.s32.totalorder %v1873, 0
      %v1875 = vsel %vm1874, %v1873, 0
      %v1876 = vshrl.u32 %v1875, 5
      %v1877 = vand.u32 %v1875, 31
      %v1878 = vsub.s32 32, %v1877
      %v1879 = vshrl.u32 683565275, %v1878
      %v1880 = vshll.u32 683565275, %v1877
      %v1881 = vshrl.u32 2475754826, %v1878
      %v1882 = vor.u32 %v1880, %v1881
      %v1883 = vshll.u32 2475754826, %v1877
      %v1884 = vshrl.u32 2131351028, %v1878
      %v1885 = vor.u32 %v1883, %v1884
      %v1886 = vshll.u32 2131351028, %v1877
      %v1887 = vshrl.u32 2102212464, %v1878
      %v1888 = vor.u32 %v1886, %v1887
      %v1889 = vshll.u32 2102212464, %v1877
      %v1890 = vshrl.u32 920167782, %v1878
      %v1891 = vor.u32 %v1889, %v1890
      %v1892 = vshll.u32 920167782, %v1877
      %v1893 = vshrl.u32 1326507024, %v1878
      %v1894 = vor.u32 %v1892, %v1893
      %vm1895 = vcmp.lt.s32.totalorder %v1876, 1
      %vm1896 = vcmp.lt.s32.totalorder %v1876, 2
      %vm1897 = vcmp.lt.s32.totalorder %v1876, 3
      %vm1898 = vcmp.lt.s32.totalorder %v1876, 4
      %v1899 = vsel %vm1895, %v1879, %v1882
      %v1900 = vsel %vm1898, %v1888, 2102212464
      %v1901 = vsel %vm1897, %v1885, %v1900
      %v1902 = vsel %vm1896, %v1899, %v1901
      %v1903 = vsel %vm1895, %v1882, %v1885
      %v1904 = vsel %vm1898, %v1891, 920167782
      %v1905 = vsel %vm1897, %v1888, %v1904
      %v1906 = vsel %vm1896, %v1903, %v1905
      %v1907 = vsel %vm1895, %v1885, %v1888
      %v1908 = vsel %vm1898, %v1894, 1326507024
      %v1909 = vsel %vm1897, %v1891, %v1908
      %v1910 = vsel %vm1896, %v1907, %v1909
      %v1911 = vshll.u32 %v1871, 8
      %v1912 = vand.u32 %v1911, 65535
      %v1913 = vshrl.u32 %v1911, 16
      %v1914 = vand.u32 %v1910, 65535
      %v1915 = vshrl.u32 %v1910, 16
      %v1916 = vmul.u32 %v1912, %v1914
      %v1917 = vmul.u32 %v1912, %v1915
      %v1918 = vmul.u32 %v1913, %v1914
      %v1919 = vmul.u32 %v1913, %v1915
      %v1920 = vshll.u32 %v1917, 16
      %v1921 = vshrl.u32 %v1917, 16
      %v1922 = vshll.u32 %v1918, 16
      %v1923 = vshrl.u32 %v1918, 16
      %vm1924 = vc.u32 %v1916, %v1920
      %v1925 = vsel %vm1924, 1, 0
      %v1926 = vadd.s32 %v1916, %v1920
      %v1927 = vadd.s32 %v1919, %v1925
      %vm1928 = vc.u32 %v1926, %v1922
      %v1929 = vsel %vm1928, 1, 0
      %v1930 = vadd.s32 %v1926, %v1922
      %v1931 = vadd.s32 %v1927, %v1929
      %v1932 = vadd.s32 %v1931, %v1921
      %v1933 = vadd.s32 %v1932, %v1923
      %v1934 = vand.u32 %v1911, 65535
      %v1935 = vshrl.u32 %v1911, 16
      %v1936 = vand.u32 %v1906, 65535
      %v1937 = vshrl.u32 %v1906, 16
      %v1938 = vmul.u32 %v1934, %v1936
      %v1939 = vmul.u32 %v1934, %v1937
      %v1940 = vmul.u32 %v1935, %v1936
      %v1941 = vmul.u32 %v1935, %v1937
      %v1942 = vshll.u32 %v1939, 16
      %v1943 = vshrl.u32 %v1939, 16
      %v1944 = vshll.u32 %v1940, 16
      %v1945 = vshrl.u32 %v1940, 16
      %vm1946 = vc.u32 %v1938, %v1942
      %v1947 = vsel %vm1946, 1, 0
      %v1948 = vadd.s32 %v1938, %v1942
      %v1949 = vadd.s32 %v1941, %v1947
      %vm1950 = vc.u32 %v1948, %v1944
      %v1951 = vsel %vm1950, 1, 0
      %v1952 = vadd.s32 %v1948, %v1944
      %v1953 = vadd.s32 %v1949, %v1951
      %v1954 = vadd.s32 %v1953, %v1943
      %v1955 = vadd.s32 %v1954, %v1945
      %v1956 = vmul.u32 %v1911, %v1902
      %v1957 = vadd.s32 %v1933, %v1952
      %vm1958 = vc.u32 %v1933, %v1952
      %v1959 = vadd.s32 %v1955, 1
      %v1960 = vsel %vm1958, %v1959, %v1955
      %v1961 = vadd.s32 %v1956, %v1960
      %v1962 = vadd.s32 %v1961, 536870912
      %v1963 = vshrl.u32 %v1962, 30
      %v1964 = vshll.u32 %v1963, 30
      %v1965 = vsub.s32 %v1961, %v1964
      %vm1966 = vcmp.lt.s32.totalorder %v1965, 0
      %v1967 = vsub.s32 0, %v1965
      %v1968 = vsel %vm1966, %v1967, %v1965
      %v1969 = vclz %v1968
      %v1970 = vsub.s32 %v1969, 2
      %vm1971 = vcmp.gt.s32.totalorder 0, %v1970
      %v1972 = vsel %vm1971, 0, %v1970
      %v1973 = vsub.s32 32, %v1972
      %v1974 = vshll.u32 %v1965, %v1972
      %v1975 = vshrl.u32 %v1957, %v1973
      %v1976 = vor.u32 %v1974, %v1975
      %v1977 = vsub.s32 4294967266, %v1972
      %v1978 = vadd.s32 %v1977, 127
      %v1979 = vshll.u32 %v1978, 23
      %v1980 = vor.u32 4788187, %v1979
      %v1981 = vand.u32 2147483647, %v1980
      %v1983 = vcvt.s32.f32 %v1976
      %v1984 = vmul.f32 %v1983, %v1981
      %v1985 = vxor.u32 %v1984, 2147483648
      %v1986 = vsel %vm1865, %v1985, %v1984
      %v1987 = vsub.s32 4, %v1963
      %v1988 = vsel %vm1865, %v1987, %v1963
      %v1989 = vsel %vm1864, %v296, %v1986
      %v1990 = vsel %vm1864, 0, %v1988
      %v1991 = vmul.f32 %v1989, %v1989
      %v1992 = vmul.f32 %v1991, -0.001358992
      %v1993 = vadd.f32 %v1992, 0.041655596
      %v1994 = vmul.f32 %v1991, %v1993
      %v1995 = vadd.f32 %v1994, -0.4999988
      %v1996 = vmul.f32 %v1991, %v1995
      %v1997 = vadd.f32 1.0, %v1996
      %v1998 = vmul.f32 %v1989, %v1989
      %v1999 = vmul.f32 %v1998, -0.00019511016
      %v2000 = vadd.f32 %v1999, 0.008332121
      %v2001 = vmul.f32 %v1998, %v2000
      %v2002 = vadd.f32 %v2001, -0.16666654
      %v2003 = vmul.f32 %v1998, %v2002
      %v2004 = vadd.f32 %v2003, 1.0
      %v2005 = vmul.f32 %v2004, %v1989
      %vm2006 = vweird.f32 %v296
      %v2007 = vadd.s32 %v1990, 3
      %v2008 = vand.u32 %v2007, 3
      %vm2009 = vcmp.lt.s32.totalorder %v2008, 2
      %vm2010 = vcmp.eq.s32.totalorder %v2008, 0
      %v2011 = vxor.u32 %v2005, 2147483648
      %v2012 = vsel %vm2010, %v1997, %v2011
      %vm2013 = vcmp.eq.s32.totalorder %v2008, 2
      %v2014 = vxor.u32 %v1997, 2147483648
      %v2015 = vsel %vm2013, %v2014, %v2005
      %v2016 = vsel %vm2009, %v2012, %v2015
      %v2017 = vsel %vm2006, nan, %v2016
      %v2018 = vand.u32 2147483647, %v299
      %vm2019 = vcmp.le.f32.partialorder %v2018, 0.7853982
      %vm2020 = vcmp.lt.s32.totalorder %v299, 0
      %v2021 = vand.u32 %v299, 2139095040
      %v2022 = vshrl.u32 %v2021, 23
      %v2023 = vsub.s32 %v2022, 127
      %v2024 = vand.u32 2147483647, %v299
      %v2025 = vand.u32 %v2024, 8388607
      %v2026 = vor.u32 %v2025, 8388608
      %v2027 = vsub.s32 0, %v2026
      %v2028 = vadd.s32 %v2023, 1
      %vm2029 = vcmp.gt.s32.totalorder %v2028, 0
      %v2030 = vsel %vm2029, %v2028, 0
      %v2031 = vshrl.u32 %v2030, 5
      %v2032 = vand.u32 %v2030, 31
      %v2033 = vsub.s32 32, %v2032
      %v2034 = vshrl.u32 683565275, %v2033
      %v2035 = vshll.u32 683565275, %v2032
      %v2036 = vshrl.u32 2475754826, %v2033
      %v2037 = vor.u32 %v2035, %v2036
      %v2038 = vshll.u32 2475754826, %v2032
      %v2039 = vshrl.u32 2131351028, %v2033
      %v2040 = vor.u32 %v2038, %v2039
      %v2041 = vshll.u32 2131351028, %v2032
      %v2042 = vshrl.u32 2102212464, %v2033
      %v2043 = vor.u32 %v2041, %v2042
      %v2044 = vshll.u32 2102212464, %v2032
      %v2045 = vshrl.u32 920167782, %v2033
      %v2046 = vor.u32 %v2044, %v2045
      %v2047 = vshll.u32 920167782, %v2032
      %v2048 = vshrl.u32 1326507024, %v2033
      %v2049 = vor.u32 %v2047, %v2048
      %vm2050 = vcmp.lt.s32.totalorder %v2031, 1
      %vm2051 = vcmp.lt.s32.totalorder %v2031, 2
      %vm2052 = vcmp.lt.s32.totalorder %v2031, 3
      %vm2053 = vcmp.lt.s32.totalorder %v2031, 4
      %v2054 = vsel %vm2050, %v2034, %v2037
      %v2055 = vsel %vm2053, %v2043, 2102212464
      %v2056 = vsel %vm2052, %v2040, %v2055
      %v2057 = vsel %vm2051, %v2054, %v2056
      %v2058 = vsel %vm2050, %v2037, %v2040
      %v2059 = vsel %vm2053, %v2046, 920167782
      %v2060 = vsel %vm2052, %v2043, %v2059
      %v2061 = vsel %vm2051, %v2058, %v2060
      %v2062 = vsel %vm2050, %v2040, %v2043
      %v2063 = vsel %vm2053, %v2049, 1326507024
      %v2064 = vsel %vm2052, %v2046, %v2063
      %v2065 = vsel %vm2051, %v2062, %v2064
      %v2066 = vshll.u32 %v2026, 8
      %v2067 = vand.u32 %v2066, 65535
      %v2068 = vshrl.u32 %v2066, 16
      %v2069 = vand.u32 %v2065, 65535
      %v2070 = vshrl.u32 %v2065, 16
      %v2071 = vmul.u32 %v2067, %v2069
      %v2072 = vmul.u32 %v2067, %v2070
      %v2073 = vmul.u32 %v2068, %v2069
      %v2074 = vmul.u32 %v2068, %v2070
      %v2075 = vshll.u32 %v2072, 16
      %v2076 = vshrl.u32 %v2072, 16
      %v2077 = vshll.u32 %v2073, 16
      %v2078 = vshrl.u32 %v2073, 16
      %vm2079 = vc.u32 %v2071, %v2075
      %v2080 = vsel %vm2079, 1, 0
      %v2081 = vadd.s32 %v2071, %v2075
      %v2082 = vadd.s32 %v2074, %v2080
      %vm2083 = vc.u32 %v2081, %v2077
      %v2084 = vsel %vm2083, 1, 0
      %v2085 = vadd.s32 %v2081, %v2077
      %v2086 = vadd.s32 %v2082, %v2084
      %v2087 = vadd.s32 %v2086, %v2076
      %v2088 = vadd.s32 %v2087, %v2078
      %v2089 = vand.u32 %v2066, 65535
      %v2090 = vshrl.u32 %v2066, 16
      %v2091 = vand.u32 %v2061, 65535
      %v2092 = vshrl.u32 %v2061, 16
      %v2093 = vmul.u32 %v2089, %v2091
      %v2094 = vmul.u32 %v2089, %v2092
      %v2095 = vmul.u32 %v2090, %v2091
      %v2096 = vmul.u32 %v2090, %v2092
      %v2097 = vshll.u32 %v2094, 16
      %v2098 = vshrl.u32 %v2094, 16
      %v2099 = vshll.u32 %v2095, 16
      %v2100 = vshrl.u32 %v2095, 16
      %vm2101 = vc.u32 %v2093, %v2097
      %v2102 = vsel %vm2101, 1, 0
      %v2103 = vadd.s32 %v2093, %v2097
      %v2104 = vadd.s32 %v2096, %v2102
      %vm2105 = vc.u32 %v2103, %v2099
      %v2106 = vsel %vm2105, 1, 0
      %v2107 = vadd.s32 %v2103, %v2099
      %v2108 = vadd.s32 %v2104, %v2106
      %v2109 = vadd.s32 %v2108, %v2098
      %v2110 = vadd.s32 %v2109, %v2100
      %v2111 = vmul.u32 %v2066, %v2057
      %v2112 = vadd.s32 %v2088, %v2107
      %vm2113 = vc.u32 %v2088, %v2107
      %v2114 = vadd.s32 %v2110, 1
      %v2115 = vsel %vm2113, %v2114, %v2110
      %v2116 = vadd.s32 %v2111, %v2115
      %v2117 = vadd.s32 %v2116, 536870912
      %v2118 = vshrl.u32 %v2117, 30
      %v2119 = vshll.u32 %v2118, 30
      %v2120 = vsub.s32 %v2116, %v2119
      %vm2121 = vcmp.lt.s32.totalorder %v2120, 0
      %v2122 = vsub.s32 0, %v2120
      %v2123 = vsel %vm2121, %v2122, %v2120
      %v2124 = vclz %v2123
      %v2125 = vsub.s32 %v2124, 2
      %vm2126 = vcmp.gt.s32.totalorder 0, %v2125
      %v2127 = vsel %vm2126, 0, %v2125
      %v2128 = vsub.s32 32, %v2127
      %v2129 = vshll.u32 %v2120, %v2127
      %v2130 = vshrl.u32 %v2112, %v2128
      %v2131 = vor.u32 %v2129, %v2130
      %v2132 = vsub.s32 4294967266, %v2127
      %v2133 = vadd.s32 %v2132, 127
      %v2134 = vshll.u32 %v2133, 23
      %v2135 = vor.u32 4788187, %v2134
      %v2136 = vand.u32 2147483647, %v2135
      %v2138 = vcvt.s32.f32 %v2131
      %v2139 = vmul.f32 %v2138, %v2136
      %v2140 = vxor.u32 %v2139, 2147483648
      %v2141 = vsel %vm2020, %v2140, %v2139
      %v2142 = vsub.s32 4, %v2118
      %v2143 = vsel %vm2020, %v2142, %v2118
      %v2144 = vsel %vm2019, %v299, %v2141
      %v2145 = vsel %vm2019, 0, %v2143
      %v2146 = vmul.f32 %v2144, %v2144
      %v2147 = vmul.f32 %v2146, -0.001358992
      %v2148 = vadd.f32 %v2147, 0.041655596
      %v2149 = vmul.f32 %v2146, %v2148
      %v2150 = vadd.f32 %v2149, -0.4999988
      %v2151 = vmul.f32 %v2146, %v2150
      %v2152 = vadd.f32 1.0, %v2151
      %v2153 = vmul.f32 %v2144, %v2144
      %v2154 = vmul.f32 %v2153, -0.00019511016
      %v2155 = vadd.f32 %v2154, 0.008332121
      %v2156 = vmul.f32 %v2153, %v2155
      %v2157 = vadd.f32 %v2156, -0.16666654
      %v2158 = vmul.f32 %v2153, %v2157
      %v2159 = vadd.f32 %v2158, 1.0
      %v2160 = vmul.f32 %v2159, %v2144
      %vm2161 = vweird.f32 %v299
      %v2162 = vadd.s32 %v2145, 3
      %v2163 = vand.u32 %v2162, 3
      %vm2164 = vcmp.lt.s32.totalorder %v2163, 2
      %vm2165 = vcmp.eq.s32.totalorder %v2163, 0
      %v2166 = vxor.u32 %v2160, 2147483648
      %v2167 = vsel %vm2165, %v2152, %v2166
      %vm2168 = vcmp.eq.s32.totalorder %v2163, 2
      %v2169 = vxor.u32 %v2152, 2147483648
      %v2170 = vsel %vm2168, %v2169, %v2160
      %v2171 = vsel %vm2164, %v2167, %v2170
      %v2172 = vsel %vm2161, nan, %v2171
      %v2173 = vand.u32 2147483647, %v302
      %vm2174 = vcmp.le.f32.partialorder %v2173, 0.7853982
      %vm2175 = vcmp.lt.s32.totalorder %v302, 0
      %v2176 = vand.u32 %v302, 2139095040
      %v2177 = vshrl.u32 %v2176, 23
      %v2178 = vsub.s32 %v2177, 127
      %v2179 = vand.u32 2147483647, %v302
      %v2180 = vand.u32 %v2179, 8388607
      %v2181 = vor.u32 %v2180, 8388608
      %v2182 = vsub.s32 0, %v2181
      %v2183 = vadd.s32 %v2178, 1
      %vm2184 = vcmp.gt.s32.totalorder %v2183, 0
      %v2185 = vsel %vm2184, %v2183, 0
      %v2186 = vshrl.u32 %v2185, 5
      %v2187 = vand.u32 %v2185, 31
      %v2188 = vsub.s32 32, %v2187
      %v2189 = vshrl.u32 683565275, %v2188
      %v2190 = vshll.u32 683565275, %v2187
      %v2191 = vshrl.u32 2475754826, %v2188
      %v2192 = vor.u32 %v2190, %v2191
      %v2193 = vshll.u32 2475754826, %v2187
      %v2194 = vshrl.u32 2131351028, %v2188
      %v2195 = vor.u32 %v2193, %v2194
      %v2196 = vshll.u32 2131351028, %v2187
      %v2197 = vshrl.u32 2102212464, %v2188
      %v2198 = vor.u32 %v2196, %v2197
      %v2199 = vshll.u32 2102212464, %v2187
      %v2200 = vshrl.u32 920167782, %v2188
      %v2201 = vor.u32 %v2199, %v2200
      %v2202 = vshll.u32 920167782, %v2187
      %v2203 = vshrl.u32 1326507024, %v2188
      %v2204 = vor.u32 %v2202, %v2203
      %vm2205 = vcmp.lt.s32.totalorder %v2186, 1
      %vm2206 = vcmp.lt.s32.totalorder %v2186, 2
      %vm2207 = vcmp.lt.s32.totalorder %v2186, 3
      %vm2208 = vcmp.lt.s32.totalorder %v2186, 4
      %v2209 = vsel %vm2205, %v2189, %v2192
      %v2210 = vsel %vm2208, %v2198, 2102212464
      %v2211 = vsel %vm2207, %v2195, %v2210
      %v2212 = vsel %vm2206, %v2209, %v2211
      %v2213 = vsel %vm2205, %v2192, %v2195
      %v2214 = vsel %vm2208, %v2201, 920167782
      %v2215 = vsel %vm2207, %v2198, %v2214
      %v2216 = vsel %vm2206, %v2213, %v2215
      %v2217 = vsel %vm2205, %v2195, %v2198
      %v2218 = vsel %vm2208, %v2204, 1326507024
      %v2219 = vsel %vm2207, %v2201, %v2218
      %v2220 = vsel %vm2206, %v2217, %v2219
      %v2221 = vshll.u32 %v2181, 8
      %v2222 = vand.u32 %v2221, 65535
      %v2223 = vshrl.u32 %v2221, 16
      %v2224 = vand.u32 %v2220, 65535
      %v2225 = vshrl.u32 %v2220, 16
      %v2226 = vmul.u32 %v2222, %v2224
      %v2227 = vmul.u32 %v2222, %v2225
      %v2228 = vmul.u32 %v2223, %v2224
      %v2229 = vmul.u32 %v2223, %v2225
      %v2230 = vshll.u32 %v2227, 16
      %v2231 = vshrl.u32 %v2227, 16
      %v2232 = vshll.u32 %v2228, 16
      %v2233 = vshrl.u32 %v2228, 16
      %vm2234 = vc.u32 %v2226, %v2230
      %v2235 = vsel %vm2234, 1, 0
      %v2236 = vadd.s32 %v2226, %v2230
      %v2237 = vadd.s32 %v2229, %v2235
      %vm2238 = vc.u32 %v2236, %v2232
      %v2239 = vsel %vm2238, 1, 0
      %v2240 = vadd.s32 %v2236, %v2232
      %v2241 = vadd.s32 %v2237, %v2239
      %v2242 = vadd.s32 %v2241, %v2231
      %v2243 = vadd.s32 %v2242, %v2233
      %v2244 = vand.u32 %v2221, 65535
      %v2245 = vshrl.u32 %v2221, 16
      %v2246 = vand.u32 %v2216, 65535
      %v2247 = vshrl.u32 %v2216, 16
      %v2248 = vmul.u32 %v2244, %v2246
      %v2249 = vmul.u32 %v2244, %v2247
      %v2250 = vmul.u32 %v2245, %v2246
      %v2251 = vmul.u32 %v2245, %v2247
      %v2252 = vshll.u32 %v2249, 16
      %v2253 = vshrl.u32 %v2249, 16
      %v2254 = vshll.u32 %v2250, 16
      %v2255 = vshrl.u32 %v2250, 16
      %vm2256 = vc.u32 %v2248, %v2252
      %v2257 = vsel %vm2256, 1, 0
      %v2258 = vadd.s32 %v2248, %v2252
      %v2259 = vadd.s32 %v2251, %v2257
      %vm2260 = vc.u32 %v2258, %v2254
      %v2261 = vsel %vm2260, 1, 0
      %v2262 = vadd.s32 %v2258, %v2254
      %v2263 = vadd.s32 %v2259, %v2261
      %v2264 = vadd.s32 %v2263, %v2253
      %v2265 = vadd.s32 %v2264, %v2255
      %v2266 = vmul.u32 %v2221, %v2212
      %v2267 = vadd.s32 %v2243, %v2262
      %vm2268 = vc.u32 %v2243, %v2262
      %v2269 = vadd.s32 %v2265, 1
      %v2270 = vsel %vm2268, %v2269, %v2265
      %v2271 = vadd.s32 %v2266, %v2270
      %v2272 = vadd.s32 %v2271, 536870912
      %v2273 = vshrl.u32 %v2272, 30
      %v2274 = vshll.u32 %v2273, 30
      %v2275 = vsub.s32 %v2271, %v2274
      %vm2276 = vcmp.lt.s32.totalorder %v2275, 0
      %v2277 = vsub.s32 0, %v2275
      %v2278 = vsel %vm2276, %v2277, %v2275
      %v2279 = vclz %v2278
      %v2280 = vsub.s32 %v2279, 2
      %vm2281 = vcmp.gt.s32.totalorder 0, %v2280
      %v2282 = vsel %vm2281, 0, %v2280
      %v2283 = vsub.s32 32, %v2282
      %v2284 = vshll.u32 %v2275, %v2282
      %v2285 = vshrl.u32 %v2267, %v2283
      %v2286 = vor.u32 %v2284, %v2285
      %v2287 = vsub.s32 4294967266, %v2282
      %v2288 = vadd.s32 %v2287, 127
      %v2289 = vshll.u32 %v2288, 23
      %v2290 = vor.u32 4788187, %v2289
      %v2291 = vand.u32 2147483647, %v2290
      %v2293 = vcvt.s32.f32 %v2286
      %v2294 = vmul.f32 %v2293, %v2291
      %v2295 = vxor.u32 %v2294, 2147483648
      %v2296 = vsel %vm2175, %v2295, %v2294
      %v2297 = vsub.s32 4, %v2273
      %v2298 = vsel %vm2175, %v2297, %v2273
      %v2299 = vsel %vm2174, %v302, %v2296
      %v2300 = vsel %vm2174, 0, %v2298
      %v2301 = vmul.f32 %v2299, %v2299
      %v2302 = vmul.f32 %v2301, -0.001358992
      %v2303 = vadd.f32 %v2302, 0.041655596
      %v2304 = vmul.f32 %v2301, %v2303
      %v2305 = vadd.f32 %v2304, -0.4999988
      %v2306 = vmul.f32 %v2301, %v2305
      %v2307 = vadd.f32 1.0, %v2306
      %v2308 = vmul.f32 %v2299, %v2299
      %v2309 = vmul.f32 %v2308, -0.00019511016
      %v2310 = vadd.f32 %v2309, 0.008332121
      %v2311 = vmul.f32 %v2308, %v2310
      %v2312 = vadd.f32 %v2311, -0.16666654
      %v2313 = vmul.f32 %v2308, %v2312
      %v2314 = vadd.f32 %v2313, 1.0
      %v2315 = vmul.f32 %v2314, %v2299
      %vm2316 = vweird.f32 %v302
      %v2317 = vadd.s32 %v2300, 3
      %v2318 = vand.u32 %v2317, 3
      %vm2319 = vcmp.lt.s32.totalorder %v2318, 2
      %vm2320 = vcmp.eq.s32.totalorder %v2318, 0
      %v2321 = vxor.u32 %v2315, 2147483648
      %v2322 = vsel %vm2320, %v2307, %v2321
      %vm2323 = vcmp.eq.s32.totalorder %v2318, 2
      %v2324 = vxor.u32 %v2307, 2147483648
      %v2325 = vsel %vm2323, %v2324, %v2315
      %v2326 = vsel %vm2319, %v2322, %v2325
      %v2327 = vsel %vm2316, nan, %v2326
      %v2328 = vand.u32 2147483647, %v305
      %vm2329 = vcmp.le.f32.partialorder %v2328, 0.7853982
      %vm2330 = vcmp.lt.s32.totalorder %v305, 0
      %v2331 = vand.u32 %v305, 2139095040
      %v2332 = vshrl.u32 %v2331, 23
      %v2333 = vsub.s32 %v2332, 127
      %v2334 = vand.u32 2147483647, %v305
      %v2335 = vand.u32 %v2334, 8388607
      %v2336 = vor.u32 %v2335, 8388608
      %v2337 = vsub.s32 0, %v2336
      %v2338 = vadd.s32 %v2333, 1
      %vm2339 = vcmp.gt.s32.totalorder %v2338, 0
      %v2340 = vsel %vm2339, %v2338, 0
      %v2341 = vshrl.u32 %v2340, 5
      %v2342 = vand.u32 %v2340, 31
      %v2343 = vsub.s32 32, %v2342
      %v2344 = vshrl.u32 683565275, %v2343
      %v2345 = vshll.u32 683565275, %v2342
      %v2346 = vshrl.u32 2475754826, %v2343
      %v2347 = vor.u32 %v2345, %v2346
      %v2348 = vshll.u32 2475754826, %v2342
      %v2349 = vshrl.u32 2131351028, %v2343
      %v2350 = vor.u32 %v2348, %v2349
      %v2351 = vshll.u32 2131351028, %v2342
      %v2352 = vshrl.u32 2102212464, %v2343
      %v2353 = vor.u32 %v2351, %v2352
      %v2354 = vshll.u32 2102212464, %v2342
      %v2355 = vshrl.u32 920167782, %v2343
      %v2356 = vor.u32 %v2354, %v2355
      %v2357 = vshll.u32 920167782, %v2342
      %v2358 = vshrl.u32 1326507024, %v2343
      %v2359 = vor.u32 %v2357, %v2358
      %vm2360 = vcmp.lt.s32.totalorder %v2341, 1
      %vm2361 = vcmp.lt.s32.totalorder %v2341, 2
      %vm2362 = vcmp.lt.s32.totalorder %v2341, 3
      %vm2363 = vcmp.lt.s32.totalorder %v2341, 4
      %v2364 = vsel %vm2360, %v2344, %v2347
      %v2365 = vsel %vm2363, %v2353, 2102212464
      %v2366 = vsel %vm2362, %v2350, %v2365
      %v2367 = vsel %vm2361, %v2364, %v2366
      %v2368 = vsel %vm2360, %v2347, %v2350
      %v2369 = vsel %vm2363, %v2356, 920167782
      %v2370 = vsel %vm2362, %v2353, %v2369
      %v2371 = vsel %vm2361, %v2368, %v2370
      %v2372 = vsel %vm2360, %v2350, %v2353
      %v2373 = vsel %vm2363, %v2359, 1326507024
      %v2374 = vsel %vm2362, %v2356, %v2373
      %v2375 = vsel %vm2361, %v2372, %v2374
      %v2376 = vshll.u32 %v2336, 8
      %v2377 = vand.u32 %v2376, 65535
      %v2378 = vshrl.u32 %v2376, 16
      %v2379 = vand.u32 %v2375, 65535
      %v2380 = vshrl.u32 %v2375, 16
      %v2381 = vmul.u32 %v2377, %v2379
      %v2382 = vmul.u32 %v2377, %v2380
      %v2383 = vmul.u32 %v2378, %v2379
      %v2384 = vmul.u32 %v2378, %v2380
      %v2385 = vshll.u32 %v2382, 16
      %v2386 = vshrl.u32 %v2382, 16
      %v2387 = vshll.u32 %v2383, 16
      %v2388 = vshrl.u32 %v2383, 16
      %vm2389 = vc.u32 %v2381, %v2385
      %v2390 = vsel %vm2389, 1, 0
      %v2391 = vadd.s32 %v2381, %v2385
      %v2392 = vadd.s32 %v2384, %v2390
      %vm2393 = vc.u32 %v2391, %v2387
      %v2394 = vsel %vm2393, 1, 0
      %v2395 = vadd.s32 %v2391, %v2387
      %v2396 = vadd.s32 %v2392, %v2394
      %v2397 = vadd.s32 %v2396, %v2386
      %v2398 = vadd.s32 %v2397, %v2388
      %v2399 = vand.u32 %v2376, 65535
      %v2400 = vshrl.u32 %v2376, 16
      %v2401 = vand.u32 %v2371, 65535
      %v2402 = vshrl.u32 %v2371, 16
      %v2403 = vmul.u32 %v2399, %v2401
      %v2404 = vmul.u32 %v2399, %v2402
      %v2405 = vmul.u32 %v2400, %v2401
      %v2406 = vmul.u32 %v2400, %v2402
      %v2407 = vshll.u32 %v2404, 16
      %v2408 = vshrl.u32 %v2404, 16
      %v2409 = vshll.u32 %v2405, 16
      %v2410 = vshrl.u32 %v2405, 16
      %vm2411 = vc.u32 %v2403, %v2407
      %v2412 = vsel %vm2411, 1, 0
      %v2413 = vadd.s32 %v2403, %v2407
      %v2414 = vadd.s32 %v2406, %v2412
      %vm2415 = vc.u32 %v2413, %v2409
      %v2416 = vsel %vm2415, 1, 0
      %v2417 = vadd.s32 %v2413, %v2409
      %v2418 = vadd.s32 %v2414, %v2416
      %v2419 = vadd.s32 %v2418, %v2408
      %v2420 = vadd.s32 %v2419, %v2410
      %v2421 = vmul.u32 %v2376, %v2367
      %v2422 = vadd.s32 %v2398, %v2417
      %vm2423 = vc.u32 %v2398, %v2417
      %v2424 = vadd.s32 %v2420, 1
      %v2425 = vsel %vm2423, %v2424, %v2420
      %v2426 = vadd.s32 %v2421, %v2425
      %v2427 = vadd.s32 %v2426, 536870912
      %v2428 = vshrl.u32 %v2427, 30
      %v2429 = vshll.u32 %v2428, 30
      %v2430 = vsub.s32 %v2426, %v2429
      %vm2431 = vcmp.lt.s32.totalorder %v2430, 0
      %v2432 = vsub.s32 0, %v2430
      %v2433 = vsel %vm2431, %v2432, %v2430
      %v2434 = vclz %v2433
      %v2435 = vsub.s32 %v2434, 2
      %vm2436 = vcmp.gt.s32.totalorder 0, %v2435
      %v2437 = vsel %vm2436, 0, %v2435
      %v2438 = vsub.s32 32, %v2437
      %v2439 = vshll.u32 %v2430, %v2437
      %v2440 = vshrl.u32 %v2422, %v2438
      %v2441 = vor.u32 %v2439, %v2440
      %v2442 = vsub.s32 4294967266, %v2437
      %v2443 = vadd.s32 %v2442, 127
      %v2444 = vshll.u32 %v2443, 23
      %v2445 = vor.u32 4788187, %v2444
      %v2446 = vand.u32 2147483647, %v2445
      %v2448 = vcvt.s32.f32 %v2441
      %v2449 = vmul.f32 %v2448, %v2446
      %v2450 = vxor.u32 %v2449, 2147483648
      %v2451 = vsel %vm2330, %v2450, %v2449
      %v2452 = vsub.s32 4, %v2428
      %v2453 = vsel %vm2330, %v2452, %v2428
      %v2454 = vsel %vm2329, %v305, %v2451
      %v2455 = vsel %vm2329, 0, %v2453
      %v2456 = vmul.f32 %v2454, %v2454
      %v2457 = vmul.f32 %v2456, -0.001358992
      %v2458 = vadd.f32 %v2457, 0.041655596
      %v2459 = vmul.f32 %v2456, %v2458
      %v2460 = vadd.f32 %v2459, -0.4999988
      %v2461 = vmul.f32 %v2456, %v2460
      %v2462 = vadd.f32 1.0, %v2461
      %v2463 = vmul.f32 %v2454, %v2454
      %v2464 = vmul.f32 %v2463, -0.00019511016
      %v2465 = vadd.f32 %v2464, 0.008332121
      %v2466 = vmul.f32 %v2463, %v2465
      %v2467 = vadd.f32 %v2466, -0.16666654
      %v2468 = vmul.f32 %v2463, %v2467
      %v2469 = vadd.f32 %v2468, 1.0
      %v2470 = vmul.f32 %v2469, %v2454
      %vm2471 = vweird.f32 %v305
      %v2472 = vadd.s32 %v2455, 3
      %v2473 = vand.u32 %v2472, 3
      %vm2474 = vcmp.lt.s32.totalorder %v2473, 2
      %vm2475 = vcmp.eq.s32.totalorder %v2473, 0
      %v2476 = vxor.u32 %v2470, 2147483648
      %v2477 = vsel %vm2475, %v2462, %v2476
      %vm2478 = vcmp.eq.s32.totalorder %v2473, 2
      %v2479 = vxor.u32 %v2462, 2147483648
      %v2480 = vsel %vm2478, %v2479, %v2470
      %v2481 = vsel %vm2474, %v2477, %v2480
      %v2482 = vsel %vm2471, nan, %v2481
      %v2483 = vand.u32 2147483647, %v308
      %vm2484 = vcmp.le.f32.partialorder %v2483, 0.7853982
      %vm2485 = vcmp.lt.s32.totalorder %v308, 0
      %v2486 = vand.u32 %v308, 2139095040
      %v2487 = vshrl.u32 %v2486, 23
      %v2488 = vsub.s32 %v2487, 127
      %v2489 = vand.u32 2147483647, %v308
      %v2490 = vand.u32 %v2489, 8388607
      %v2491 = vor.u32 %v2490, 8388608
      %v2492 = vsub.s32 0, %v2491
      %v2493 = vadd.s32 %v2488, 1
      %vm2494 = vcmp.gt.s32.totalorder %v2493, 0
      %v2495 = vsel %vm2494, %v2493, 0
      %v2496 = vshrl.u32 %v2495, 5
      %v2497 = vand.u32 %v2495, 31
      %v2498 = vsub.s32 32, %v2497
      %v2499 = vshrl.u32 683565275, %v2498
      %v2500 = vshll.u32 683565275, %v2497
      %v2501 = vshrl.u32 2475754826, %v2498
      %v2502 = vor.u32 %v2500, %v2501
      %v2503 = vshll.u32 2475754826, %v2497
      %v2504 = vshrl.u32 2131351028, %v2498
      %v2505 = vor.u32 %v2503, %v2504
      %v2506 = vshll.u32 2131351028, %v2497
      %v2507 = vshrl.u32 2102212464, %v2498
      %v2508 = vor.u32 %v2506, %v2507
      %v2509 = vshll.u32 2102212464, %v2497
      %v2510 = vshrl.u32 920167782, %v2498
      %v2511 = vor.u32 %v2509, %v2510
      %v2512 = vshll.u32 920167782, %v2497
      %v2513 = vshrl.u32 1326507024, %v2498
      %v2514 = vor.u32 %v2512, %v2513
      %vm2515 = vcmp.lt.s32.totalorder %v2496, 1
      %vm2516 = vcmp.lt.s32.totalorder %v2496, 2
      %vm2517 = vcmp.lt.s32.totalorder %v2496, 3
      %vm2518 = vcmp.lt.s32.totalorder %v2496, 4
      %v2519 = vsel %vm2515, %v2499, %v2502
      %v2520 = vsel %vm2518, %v2508, 2102212464
      %v2521 = vsel %vm2517, %v2505, %v2520
      %v2522 = vsel %vm2516, %v2519, %v2521
      %v2523 = vsel %vm2515, %v2502, %v2505
      %v2524 = vsel %vm2518, %v2511, 920167782
      %v2525 = vsel %vm2517, %v2508, %v2524
      %v2526 = vsel %vm2516, %v2523, %v2525
      %v2527 = vsel %vm2515, %v2505, %v2508
      %v2528 = vsel %vm2518, %v2514, 1326507024
      %v2529 = vsel %vm2517, %v2511, %v2528
      %v2530 = vsel %vm2516, %v2527, %v2529
      %v2531 = vshll.u32 %v2491, 8
      %v2532 = vand.u32 %v2531, 65535
      %v2533 = vshrl.u32 %v2531, 16
      %v2534 = vand.u32 %v2530, 65535
      %v2535 = vshrl.u32 %v2530, 16
      %v2536 = vmul.u32 %v2532, %v2534
      %v2537 = vmul.u32 %v2532, %v2535
      %v2538 = vmul.u32 %v2533, %v2534
      %v2539 = vmul.u32 %v2533, %v2535
      %v2540 = vshll.u32 %v2537, 16
      %v2541 = vshrl.u32 %v2537, 16
      %v2542 = vshll.u32 %v2538, 16
      %v2543 = vshrl.u32 %v2538, 16
      %vm2544 = vc.u32 %v2536, %v2540
      %v2545 = vsel %vm2544, 1, 0
      %v2546 = vadd.s32 %v2536, %v2540
      %v2547 = vadd.s32 %v2539, %v2545
      %vm2548 = vc.u32 %v2546, %v2542
      %v2549 = vsel %vm2548, 1, 0
      %v2550 = vadd.s32 %v2546, %v2542
      %v2551 = vadd.s32 %v2547, %v2549
      %v2552 = vadd.s32 %v2551, %v2541
      %v2553 = vadd.s32 %v2552, %v2543
      %v2554 = vand.u32 %v2531, 65535
      %v2555 = vshrl.u32 %v2531, 16
      %v2556 = vand.u32 %v2526, 65535
      %v2557 = vshrl.u32 %v2526, 16
      %v2558 = vmul.u32 %v2554, %v2556
      %v2559 = vmul.u32 %v2554, %v2557
      %v2560 = vmul.u32 %v2555, %v2556
      %v2561 = vmul.u32 %v2555, %v2557
      %v2562 = vshll.u32 %v2559, 16
      %v2563 = vshrl.u32 %v2559, 16
      %v2564 = vshll.u32 %v2560, 16
      %v2565 = vshrl.u32 %v2560, 16
      %vm2566 = vc.u32 %v2558, %v2562
      %v2567 = vsel %vm2566, 1, 0
      %v2568 = vadd.s32 %v2558, %v2562
      %v2569 = vadd.s32 %v2561, %v2567
      %vm2570 = vc.u32 %v2568, %v2564
      %v2571 = vsel %vm2570, 1, 0
      %v2572 = vadd.s32 %v2568, %v2564
      %v2573 = vadd.s32 %v2569, %v2571
      %v2574 = vadd.s32 %v2573, %v2563
      %v2575 = vadd.s32 %v2574, %v2565
      %v2576 = vmul.u32 %v2531, %v2522
      %v2577 = vadd.s32 %v2553, %v2572
      %vm2578 = vc.u32 %v2553, %v2572
      %v2579 = vadd.s32 %v2575, 1
      %v2580 = vsel %vm2578, %v2579, %v2575
      %v2581 = vadd.s32 %v2576, %v2580
      %v2582 = vadd.s32 %v2581, 536870912
      %v2583 = vshrl.u32 %v2582, 30
      %v2584 = vshll.u32 %v2583, 30
      %v2585 = vsub.s32 %v2581, %v2584
      %vm2586 = vcmp.lt.s32.totalorder %v2585, 0
      %v2587 = vsub.s32 0, %v2585
      %v2588 = vsel %vm2586, %v2587, %v2585
      %v2589 = vclz %v2588
      %v2590 = vsub.s32 %v2589, 2
      %vm2591 = vcmp.gt.s32.totalorder 0, %v2590
      %v2592 = vsel %vm2591, 0, %v2590
      %v2593 = vsub.s32 32, %v2592
      %v2594 = vshll.u32 %v2585, %v2592
      %v2595 = vshrl.u32 %v2577, %v2593
      %v2596 = vor.u32 %v2594, %v2595
      %v2597 = vsub.s32 4294967266, %v2592
      %v2598 = vadd.s32 %v2597, 127
      %v2599 = vshll.u32 %v2598, 23
      %v2600 = vor.u32 4788187, %v2599
      %v2601 = vand.u32 2147483647, %v2600
      %v2603 = vcvt.s32.f32 %v2596
      %v2604 = vmul.f32 %v2603, %v2601
      %v2605 = vxor.u32 %v2604, 2147483648
      %v2606 = vsel %vm2485, %v2605, %v2604
      %v2607 = vsub.s32 4, %v2583
      %v2608 = vsel %vm2485, %v2607, %v2583
      %v2609 = vsel %vm2484, %v308, %v2606
      %v2610 = vsel %vm2484, 0, %v2608
      %v2611 = vmul.f32 %v2609, %v2609
      %v2612 = vmul.f32 %v2611, -0.001358992
      %v2613 = vadd.f32 %v2612, 0.041655596
      %v2614 = vmul.f32 %v2611, %v2613
      %v2615 = vadd.f32 %v2614, -0.4999988
      %v2616 = vmul.f32 %v2611, %v2615
      %v2617 = vadd.f32 1.0, %v2616
      %v2618 = vmul.f32 %v2609, %v2609
      %v2619 = vmul.f32 %v2618, -0.00019511016
      %v2620 = vadd.f32 %v2619, 0.008332121
      %v2621 = vmul.f32 %v2618, %v2620
      %v2622 = vadd.f32 %v2621, -0.16666654
      %v2623 = vmul.f32 %v2618, %v2622
      %v2624 = vadd.f32 %v2623, 1.0
      %v2625 = vmul.f32 %v2624, %v2609
      %vm2626 = vweird.f32 %v308
      %v2627 = vadd.s32 %v2610, 3
      %v2628 = vand.u32 %v2627, 3
      %vm2629 = vcmp.lt.s32.totalorder %v2628, 2
      %vm2630 = vcmp.eq.s32.totalorder %v2628, 0
      %v2631 = vxor.u32 %v2625, 2147483648
      %v2632 = vsel %vm2630, %v2617, %v2631
      %vm2633 = vcmp.eq.s32.totalorder %v2628, 2
      %v2634 = vxor.u32 %v2617, 2147483648
      %v2635 = vsel %vm2633, %v2634, %v2625
      %v2636 = vsel %vm2629, %v2632, %v2635
      %v2637 = vsel %vm2626, nan, %v2636
      %v2638 = vand.u32 2147483647, %v311
      %vm2639 = vcmp.le.f32.partialorder %v2638, 0.7853982
      %vm2640 = vcmp.lt.s32.totalorder %v311, 0
      %v2641 = vand.u32 %v311, 2139095040
      %v2642 = vshrl.u32 %v2641, 23
      %v2643 = vsub.s32 %v2642, 127
      %v2644 = vand.u32 2147483647, %v311
      %v2645 = vand.u32 %v2644, 8388607
      %v2646 = vor.u32 %v2645, 8388608
      %v2647 = vsub.s32 0, %v2646
      %v2648 = vadd.s32 %v2643, 1
      %vm2649 = vcmp.gt.s32.totalorder %v2648, 0
      %v2650 = vsel %vm2649, %v2648, 0
      %v2651 = vshrl.u32 %v2650, 5
      %v2652 = vand.u32 %v2650, 31
      %v2653 = vsub.s32 32, %v2652
      %v2654 = vshrl.u32 683565275, %v2653
      %v2655 = vshll.u32 683565275, %v2652
      %v2656 = vshrl.u32 2475754826, %v2653
      %v2657 = vor.u32 %v2655, %v2656
      %v2658 = vshll.u32 2475754826, %v2652
      %v2659 = vshrl.u32 2131351028, %v2653
      %v2660 = vor.u32 %v2658, %v2659
      %v2661 = vshll.u32 2131351028, %v2652
      %v2662 = vshrl.u32 2102212464, %v2653
      %v2663 = vor.u32 %v2661, %v2662
      %v2664 = vshll.u32 2102212464, %v2652
      %v2665 = vshrl.u32 920167782, %v2653
      %v2666 = vor.u32 %v2664, %v2665
      %v2667 = vshll.u32 920167782, %v2652
      %v2668 = vshrl.u32 1326507024, %v2653
      %v2669 = vor.u32 %v2667, %v2668
      %vm2670 = vcmp.lt.s32.totalorder %v2651, 1
      %vm2671 = vcmp.lt.s32.totalorder %v2651, 2
      %vm2672 = vcmp.lt.s32.totalorder %v2651, 3
      %vm2673 = vcmp.lt.s32.totalorder %v2651, 4
      %v2674 = vsel %vm2670, %v2654, %v2657
      %v2675 = vsel %vm2673, %v2663, 2102212464
      %v2676 = vsel %vm2672, %v2660, %v2675
      %v2677 = vsel %vm2671, %v2674, %v2676
      %v2678 = vsel %vm2670, %v2657, %v2660
      %v2679 = vsel %vm2673, %v2666, 920167782
      %v2680 = vsel %vm2672, %v2663, %v2679
      %v2681 = vsel %vm2671, %v2678, %v2680
      %v2682 = vsel %vm2670, %v2660, %v2663
      %v2683 = vsel %vm2673, %v2669, 1326507024
      %v2684 = vsel %vm2672, %v2666, %v2683
      %v2685 = vsel %vm2671, %v2682, %v2684
      %v2686 = vshll.u32 %v2646, 8
      %v2687 = vand.u32 %v2686, 65535
      %v2688 = vshrl.u32 %v2686, 16
      %v2689 = vand.u32 %v2685, 65535
      %v2690 = vshrl.u32 %v2685, 16
      %v2691 = vmul.u32 %v2687, %v2689
      %v2692 = vmul.u32 %v2687, %v2690
      %v2693 = vmul.u32 %v2688, %v2689
      %v2694 = vmul.u32 %v2688, %v2690
      %v2695 = vshll.u32 %v2692, 16
      %v2696 = vshrl.u32 %v2692, 16
      %v2697 = vshll.u32 %v2693, 16
      %v2698 = vshrl.u32 %v2693, 16
      %vm2699 = vc.u32 %v2691, %v2695
      %v2700 = vsel %vm2699, 1, 0
      %v2701 = vadd.s32 %v2691, %v2695
      %v2702 = vadd.s32 %v2694, %v2700
      %vm2703 = vc.u32 %v2701, %v2697
      %v2704 = vsel %vm2703, 1, 0
      %v2705 = vadd.s32 %v2701, %v2697
      %v2706 = vadd.s32 %v2702, %v2704
      %v2707 = vadd.s32 %v2706, %v2696
      %v2708 = vadd.s32 %v2707, %v2698
      %v2709 = vand.u32 %v2686, 65535
      %v2710 = vshrl.u32 %v2686, 16
      %v2711 = vand.u32 %v2681, 65535
      %v2712 = vshrl.u32 %v2681, 16
      %v2713 = vmul.u32 %v2709, %v2711
      %v2714 = vmul.u32 %v2709, %v2712
      %v2715 = vmul.u32 %v2710, %v2711
      %v2716 = vmul.u32 %v2710, %v2712
      %v2717 = vshll.u32 %v2714, 16
      %v2718 = vshrl.u32 %v2714, 16
      %v2719 = vshll.u32 %v2715, 16
      %v2720 = vshrl.u32 %v2715, 16
      %vm2721 = vc.u32 %v2713, %v2717
      %v2722 = vsel %vm2721, 1, 0
      %v2723 = vadd.s32 %v2713, %v2717
      %v2724 = vadd.s32 %v2716, %v2722
      %vm2725 = vc.u32 %v2723, %v2719
      %v2726 = vsel %vm2725, 1, 0
      %v2727 = vadd.s32 %v2723, %v2719
      %v2728 = vadd.s32 %v2724, %v2726
      %v2729 = vadd.s32 %v2728, %v2718
      %v2730 = vadd.s32 %v2729, %v2720
      %v2731 = vmul.u32 %v2686, %v2677
      %v2732 = vadd.s32 %v2708, %v2727
      %vm2733 = vc.u32 %v2708, %v2727
      %v2734 = vadd.s32 %v2730, 1
      %v2735 = vsel %vm2733, %v2734, %v2730
      %v2736 = vadd.s32 %v2731, %v2735
      %v2737 = vadd.s32 %v2736, 536870912
      %v2738 = vshrl.u32 %v2737, 30
      %v2739 = vshll.u32 %v2738, 30
      %v2740 = vsub.s32 %v2736, %v2739
      %vm2741 = vcmp.lt.s32.totalorder %v2740, 0
      %v2742 = vsub.s32 0, %v2740
      %v2743 = vsel %vm2741, %v2742, %v2740
      %v2744 = vclz %v2743
      %v2745 = vsub.s32 %v2744, 2
      %vm2746 = vcmp.gt.s32.totalorder 0, %v2745
      %v2747 = vsel %vm2746, 0, %v2745
      %v2748 = vsub.s32 32, %v2747
      %v2749 = vshll.u32 %v2740, %v2747
      %v2750 = vshrl.u32 %v2732, %v2748
      %v2751 = vor.u32 %v2749, %v2750
      %v2752 = vsub.s32 4294967266, %v2747
      %v2753 = vadd.s32 %v2752, 127
      %v2754 = vshll.u32 %v2753, 23
      %v2755 = vor.u32 4788187, %v2754
      %v2756 = vand.u32 2147483647, %v2755
      %v2758 = vcvt.s32.f32 %v2751
      %v2759 = vmul.f32 %v2758, %v2756
      %v2760 = vxor.u32 %v2759, 2147483648
      %v2761 = vsel %vm2640, %v2760, %v2759
      %v2762 = vsub.s32 4, %v2738
      %v2763 = vsel %vm2640, %v2762, %v2738
      %v2764 = vsel %vm2639, %v311, %v2761
      %v2765 = vsel %vm2639, 0, %v2763
      %v2766 = vmul.f32 %v2764, %v2764
      %v2767 = vmul.f32 %v2766, -0.001358992
      %v2768 = vadd.f32 %v2767, 0.041655596
      %v2769 = vmul.f32 %v2766, %v2768
      %v2770 = vadd.f32 %v2769, -0.4999988
      %v2771 = vmul.f32 %v2766, %v2770
      %v2772 = vadd.f32 1.0, %v2771
      %v2773 = vmul.f32 %v2764, %v2764
      %v2774 = vmul.f32 %v2773, -0.00019511016
      %v2775 = vadd.f32 %v2774, 0.008332121
      %v2776 = vmul.f32 %v2773, %v2775
      %v2777 = vadd.f32 %v2776, -0.16666654
      %v2778 = vmul.f32 %v2773, %v2777
      %v2779 = vadd.f32 %v2778, 1.0
      %v2780 = vmul.f32 %v2779, %v2764
      %vm2781 = vweird.f32 %v311
      %v2782 = vadd.s32 %v2765, 3
      %v2783 = vand.u32 %v2782, 3
      %vm2784 = vcmp.lt.s32.totalorder %v2783, 2
      %vm2785 = vcmp.eq.s32.totalorder %v2783, 0
      %v2786 = vxor.u32 %v2780, 2147483648
      %v2787 = vsel %vm2785, %v2772, %v2786
      %vm2788 = vcmp.eq.s32.totalorder %v2783, 2
      %v2789 = vxor.u32 %v2772, 2147483648
      %v2790 = vsel %vm2788, %v2789, %v2780
      %v2791 = vsel %vm2784, %v2787, %v2790
      %v2792 = vsel %vm2781, nan, %v2791
      %vm2793 = vcmask 261120
      %2794 = vst.msk [vmem:[%s172] sm:$0xff] %vm2793, %v467
      %2795 = vst.msk [vmem:[%s172 + $0x8] sm:$0xff] %vm2793, %v622
      %2796 = vst.msk [vmem:[%s172 + $0x10] sm:$0xff] %vm2793, %v777
      %2797 = vst.msk [vmem:[%s172 + $0x18] sm:$0xff] %vm2793, %v932
      %2798 = vst.msk [vmem:[%s172 + $0x20] sm:$0xff] %vm2793, %v1087
      %2799 = vst.msk [vmem:[%s172 + $0x28] sm:$0xff] %vm2793, %v1242
      %2800 = vst.msk [vmem:[%s172 + $0x30] sm:$0xff] %vm2793, %v1397
      %2801 = vst.msk [vmem:[%s172 + $0x38] sm:$0xff] %vm2793, %v1552
      %2802 = vst.msk [vmem:[%s172 + $0x40] sm:$0xff] %vm2793, %v1707
      %2803 = vst.msk [vmem:[%s172 + $0x48] sm:$0xff] %vm2793, %v1862
      %2804 = vst.msk [vmem:[%s172 + $0x50] sm:$0xff] %vm2793, %v2017
      %2805 = vst.msk [vmem:[%s172 + $0x58] sm:$0xff] %vm2793, %v2172
      %2806 = vst.msk [vmem:[%s172 + $0x60] sm:$0xff] %vm2793, %v2327
      %2807 = vst.msk [vmem:[%s172 + $0x68] sm:$0xff] %vm2793, %v2482
      %2808 = vst.msk [vmem:[%s172 + $0x70] sm:$0xff] %vm2793, %v2637
      %2809 = vst.msk [vmem:[%s172 + $0x78] sm:$0xff] %vm2793, %v2792
      %s2810 = smul.u32 16, %s14
      %p2811 = scmp.lt.s32.totalorder %s2810, 31
      %s2812 = scalar_select %p2811, %s2810, 31
      %s2813 = smul.addr %s2812, 8
      %s2814 = scalar_lea.vmem %s3, %s2813
      // Predicated region
      $region33: #{tpu_custom_call.1} parent=31 // pred_check
        %p2815 = pneg %p100
      $region34: #{tpu_custom_call.1} parent=31 // pred_check_branch
        %2817 = sbr.rel (%p2815) target = $region36
      $region35: #{tpu_custom_call.1} parent=31 // pred_region
        %s2818 = smul.u32 16, %s14
      $region36: #{tpu_custom_call.1} parent=31 // pred_fallthru
        _
    $region32: #{tpu_custom_call.1} parent=5 // pred_fallthru
      _
    %p2819 = scmp.le.s32.totalorder 2, %s9
    // Predicated region
    $region37: #{tpu_custom_call.1} parent=5 // pred_check
      %p2820 = pneg %p2819
    $region38: #{tpu_custom_call.1} parent=5 // pred_check_branch
      %2822 = sbr.rel (%p2820) target = $region40
    $region39: #{tpu_custom_call.1} parent=5 // pred_region
      %s2823 = ssub.s32 %s9, 2
      // Predicated region
      $region41: #{tpu_custom_call.1} parent=39 // pred_check
        %p2824 = pneg %p106
      $region42: #{tpu_custom_call.1} parent=39 // pred_check_branch
        %2826 = sbr.rel (%p2824) target = $region44
      $region43: #{tpu_custom_call.1} parent=39 // pred_region
        %s2827 = smul.u32 16, %s15
        %p2828 = scmp.lt.s32.totalorder %s2827, 31
        %s2829 = scalar_select %p2828, %s2827, 31
        %s2830 = smul.addr %s2829, 8
        %s2831 = scalar_lea.vmem %s3, %s2830
      $region44: #{tpu_custom_call.1} parent=39 // pred_fallthru
        _
    $region40: #{tpu_custom_call.1} parent=5 // pred_fallthru
      _
  $region6: #{tpu_custom_call.1} parent=0 // loop_footer
    %s13 = sadd.s32 1, %s9
  $region7: #{tpu_custom_call.1} parent=0 // loop_footer_branch
    %8 = sbr.rel target = $region3
  $region8: #{tpu_custom_call.1} parent=0 // loop_exit
    _

</llo_original>
